<compile_context>
chip_gen: v7x
topology: tpu7x:2x2x1
jax: 0.10.0
libtpu: 0.0.40
codegen_flags: <defaults>
</compile_context>

<pallas_src>
import functools

import jax
import jax.numpy as jnp
from jax import lax
from jax.experimental import pallas as pl
from jax.experimental.pallas import tpu as pltpu

LRELU_SLOPE = 0.01   # F.leaky_relu default negative_slope used by lrelu()
IN_EPS = 1e-5        # nn.InstanceNorm2d default eps (affine=False, biased var)


# ---------------------------------------------------------------------------
# Fused kernel: [maxpool2x2] -> conv1+IN -> conv2+IN+lrelu -> conv3+IN+lrelu
# One grid step processes B whole images (per-image stats == instance norm).
# ---------------------------------------------------------------------------
def _convd_fused_kernel(x_ref, w1_ref, w2_ref, w3_ref, o_ref, pad1_ref, pad2_ref,
                        *, B, Ho, Wo, Cin, Cout, pool):
    """x_ref: (B,Ho,2,Wo,2*Cin) bf16 if pool else (B,Ho,Wo,Cin) bf16.
    w*_ref: (9*Cin_stage, Cout) bf16, rows ordered (kh, kw, cin).
    o_ref : (B, Ho*Wo, Cout) f32.
    pad1_ref / pad2_ref: VMEM f32 scratch holding zero-padded stage inputs."""
    HW = Ho * Wo
    inv_hw = 1.0 / float(HW)

    # ---- fused 2x2 / stride-2 maxpool ------------------------------------
    if pool:
        x = x_ref[...]                                    # (B, Ho, 2, Wo, 2*Cin)
        xh = jnp.maximum(x[:, :, 0], x[:, :, 1])          # row pairs -> (B,Ho,Wo,2*Cin)
        xp = jnp.maximum(xh[..., :Cin], xh[..., Cin:])    # col pairs -> (B,Ho,Wo,Cin)
    else:
        xp = x_ref[...]                                   # (B, Ho, Wo, Cin)

    # Zero-padded stage inputs live in VMEM scratch. Borders are zeroed once
    # per grid step; only the interior is overwritten between stages.
    pad1_ref[...] = jnp.zeros_like(pad1_ref)
    pad2_ref[...] = jnp.zeros_like(pad2_ref)
    pad1_ref[:, 1:Ho + 1, 1:Wo + 1, :] = xp.astype(jnp.float32)

    def conv_in_stage(pad_ref, w_ref, c_in, apply_lrelu):
        # im2col: 9 shifted windows concatenated along lanes -> one MXU matmul.
        cols = [pad_ref[:, kh:kh + Ho, kw:kw + Wo, :]
                for kh in range(3) for kw in range(3)]
        patches = jnp.concatenate(cols, axis=-1)           # (B, Ho, Wo, 9*c_in)
        patches = patches.reshape(B * HW, 9 * c_in).astype(jnp.bfloat16)
        acc = jnp.dot(patches, w_ref[...],                 # bf16 x bf16 -> f32
                      preferred_element_type=jnp.float32)
        acc = acc.reshape(B, HW, Cout)

        # InstanceNorm2d (affine=False, biased var), one-pass stats per image.
        mean = jnp.sum(acc, axis=1, keepdims=True) * inv_hw
        ex2 = jnp.sum(acc * acc, axis=1, keepdims=True) * inv_hw
        var = jnp.maximum(ex2 - mean * mean, 0.0)
        y = (acc - mean) * lax.rsqrt(var + IN_EPS)
        if apply_lrelu:
            y = jnp.where(y >= 0, y, LRELU_SLOPE * y)
        return y                                           # (B, HW, Cout) f32

    x1 = conv_in_stage(pad1_ref, w1_ref, Cin, apply_lrelu=False)   # conv1 + IN
    pad2_ref[:, 1:Ho + 1, 1:Wo + 1, :] = x1.reshape(B, Ho, Wo, Cout)
    y2 = conv_in_stage(pad2_ref, w2_ref, Cout, apply_lrelu=True)   # conv2 + IN + lrelu
    pad2_ref[:, 1:Ho + 1, 1:Wo + 1, :] = y2.reshape(B, Ho, Wo, Cout)
    z3 = conv_in_stage(pad2_ref, w3_ref, Cout, apply_lrelu=True)   # conv3 + IN + lrelu
    o_ref[...] = z3


# ---------------------------------------------------------------------------
# Wrappers
# ---------------------------------------------------------------------------
def _prep_weight(w):
    """(3,3,Cin,Cout) -> (9*Cin,Cout) bf16; row order (kh,kw,cin) matches im2col."""
    kh, kw, ci, co = w.shape
    return w.reshape(kh * kw * ci, co).astype(jnp.bfloat16)


def convd_forward_nhwc(x_nhwc, params, first=False, batch_block=1):
    """NHWC-native ConvD forward (preferred: avoids NCHW<->NHWC HBM transposes)."""
    N, H, W, Cin = x_nhwc.shape
    Cout = params["w1"].shape[-1]
    B = batch_block
    assert N % B == 0, "batch_block must divide the batch size"

    if not first:
        # PyTorch MaxPool2d floors: crop odd spatial dims.
        He, We = (H // 2) * 2, (W // 2) * 2
        if (He, We) != (H, W):
            x_nhwc = x_nhwc[:, :He, :We, :]
        Ho, Wo = He // 2, We // 2
        # Free row-major reshape so the kernel pools with a leading-dim max and
        # a lane-split max (no strided slicing, no 4x taps tensor).
        x_in = x_nhwc.astype(jnp.bfloat16).reshape(N, Ho, 2, Wo, 2 * Cin)
        in_block = (B, Ho, 2, Wo, 2 * Cin)
        in_map = lambda n: (n, 0, 0, 0, 0)
    else:
        Ho, Wo = H, W
        x_in = x_nhwc.astype(jnp.bfloat16)
        in_block = (B, Ho, Wo, Cin)
        in_map = lambda n: (n, 0, 0, 0)

    HW = Ho * Wo
    w1m = _prep_weight(params["w1"])
    w2m = _prep_weight(params["w2"])
    w3m = _prep_weight(params["w3"])
    # NOTE: conv biases (params["b*"]) are intentionally unused: a per-channel
    # constant added before InstanceNorm(affine=False) cancels exactly.

    kernel = functools.partial(_convd_fused_kernel, B=B, Ho=Ho, Wo=Wo,
                               Cin=Cin, Cout=Cout, pool=not first)
    out = pl.pallas_call(
        kernel,
        out_shape=jax.ShapeDtypeStruct((N, HW, Cout), jnp.float32),
        grid=(N // B,),
        in_specs=[
            pl.BlockSpec(in_block, in_map),
            pl.BlockSpec(w1m.shape, lambda n: (0, 0)),
            pl.BlockSpec(w2m.shape, lambda n: (0, 0)),
            pl.BlockSpec(w3m.shape, lambda n: (0, 0)),
        ],
        out_specs=pl.BlockSpec((B, HW, Cout), lambda n: (n, 0, 0)),
        scratch_shapes=[
            pltpu.VMEM((B, Ho + 2, Wo + 2, Cin), jnp.float32),
            pltpu.VMEM((B, Ho + 2, Wo + 2, Cout), jnp.float32),
        ],
        compiler_params=pltpu.CompilerParams(
            dimension_semantics=("parallel",),
            vmem_limit_bytes=32 * 1024 * 1024,
        ),
    )(x_in, w1m, w2m, w3m)
    return out.reshape(N, Ho, Wo, Cout)


def convd_forward(x_nchw, params, first=False, batch_block=1):
    """NCHW wrapper for PyTorch-layout parity. The two transposes are full HBM
    round trips done by XLA; prefer convd_forward_nhwc in NHWC pipelines."""
    x = jnp.transpose(x_nchw, (0, 2, 3, 1))
    z = convd_forward_nhwc(x, params, first=first, batch_block=batch_block)
    return jnp.transpose(z, (0, 3, 1, 2))
    # TODO(synk): meta_loss / meta_step_size / stop_gradient is a training-time
    # gradient-based weight perturbation (autograd), not a forward Pallas kernel.


# ---------------------------------------------------------------------------
# Parameters + pure-JAX reference
# ---------------------------------------------------------------------------
def init_convd_params(key, inplanes, planes):
    """Deterministic init matching PyTorch Conv2d shapes (kaiming-uniform-ish).
    Biases are kept for API parity but are a no-op before InstanceNorm."""
    ks = jax.random.split(key, 6)

    def conv_w(k, cin, cout):
        bound = 1.0 / ((cin * 9) ** 0.5)
        return jax.random.uniform(k, (3, 3, cin, cout), jnp.float32, -bound, bound)

    def conv_b(k, cin, cout):
        bound = 1.0 / ((cin * 9) ** 0.5)
        return jax.random.uniform(k, (cout,), jnp.float32, -bound, bound)

    return {
        "w1": conv_w(ks[0], inplanes, planes), "b1": conv_b(ks[1], inplanes, planes),
        "w2": conv_w(ks[2], planes, planes),   "b2": conv_b(ks[3], planes, planes),
        "w3": conv_w(ks[4], planes, planes),   "b3": conv_b(ks[5], planes, planes),
    }


def _ref_forward_nhwc(x, params, first=False):
    """Pure-JAX (XLA) reference of the same forward, for a sanity check."""
    x = x.astype(jnp.float32)
    if not first:
        x = lax.reduce_window(x, -jnp.inf, lax.max,
                              (1, 2, 2, 1), (1, 2, 2, 1), "VALID")

    def conv_in(inp, w, apply_lrelu):
        y = lax.conv_general_dilated(inp, w, (1, 1), ((1, 1), (1, 1)),
                                     dimension_numbers=("NHWC", "HWIO", "NHWC"),
                                     precision=lax.Precision.HIGHEST)
        m = jnp.mean(y, axis=(1, 2), keepdims=True)
        v = jnp.mean((y - m) ** 2, axis=(1, 2), keepdims=True)
        y = (y - m) * lax.rsqrt(v + IN_EPS)
        return jnp.where(y >= 0, y, LRELU_SLOPE * y) if apply_lrelu else y

    a = conv_in(x, params["w1"], False)   # no lrelu after conv1
    b = conv_in(a, params["w2"], True)
    return conv_in(b, params["w3"], True)


if __name__ == "__main__":
    key = jax.random.PRNGKey(0)
    k_x, k_p = jax.random.split(key)

    N, Cin, H, W = 2, 4, 16, 16   # NCHW, like the PyTorch module input
    planes = 8

    x = jax.random.normal(k_x, (N, Cin, H, W), dtype=jnp.float32)
    params = init_convd_params(k_p, Cin, planes)

    out = convd_forward(x, params, first=False)          # -> (N, planes, H//2, W//2)
    out = jax.block_until_ready(out)
    assert out.shape == (N, planes, H // 2, W // 2)

    # Sanity check vs. pure-JAX reference (loose tol: kernel uses bf16 MXU matmuls
    # and bf16 input; a real bug — wrong tap order / offsets — gives O(1) errors).
    ref = _ref_forward_nhwc(jnp.transpose(x, (0, 2, 3, 1)), params, first=False)
    ref = jnp.transpose(ref, (0, 3, 1, 2))
    err = float(jnp.max(jnp.abs(out - ref)))
    assert err < 0.35, f"mismatch vs reference: max abs err={err}"

    print("KERNEL_OK")
</pallas_src>

<mosaic_0001>
module attributes {stable_mosaic.version = 11 : i64} {
  func.func @_convd_fused_kernel(%arg0: i32, %arg1: memref<1x8x2x8x8xbf16, #tpu.memory_space<vmem>>, %arg2: memref<36x8xbf16, #tpu.memory_space<vmem>>, %arg3: memref<72x8xbf16, #tpu.memory_space<vmem>>, %arg4: memref<72x8xbf16, #tpu.memory_space<vmem>>, %arg5: memref<1x64x8xf32, #tpu.memory_space<vmem>>, %arg6: memref<1x10x10x4xf32, #tpu.memory_space<vmem>>, %arg7: memref<1x10x10x8xf32, #tpu.memory_space<vmem>>) attributes {dimension_semantics = [#tpu.dimension_semantics<parallel>], iteration_bounds = array<i64: 2>, scalar_prefetch = 0 : i64, scratch_operands = 2 : i64, tpu.core_type = #tpu.core_type<tc>, window_params = [{transform_indices = @transform_0, window_bounds = array<i64: 1, 8, 2, 8, 8>}, {pipeline_mode = #tpu.pipeline_mode<synchronous>, transform_indices = @transform_1, window_bounds = array<i64: 36, 8>}, {pipeline_mode = #tpu.pipeline_mode<synchronous>, transform_indices = @transform_2, window_bounds = array<i64: 72, 8>}, {pipeline_mode = #tpu.pipeline_mode<synchronous>, transform_indices = @transform_3, window_bounds = array<i64: 72, 8>}, {transform_indices = @transform_4, window_bounds = array<i64: 1, 64, 8>}]} {
    %c0 = arith.constant 0 : index
    %c0_0 = arith.constant 0 : index
    %c0_1 = arith.constant 0 : index
    %c0_2 = arith.constant 0 : index
    %c0_3 = arith.constant 0 : index
    %0 = vector.load %arg1[%c0, %c0_0, %c0_1, %c0_2, %c0_3] : memref<1x8x2x8x8xbf16, #tpu.memory_space<vmem>>, vector<1x8x2x8x8xbf16>
    %1 = vector.extract_strided_slice %0 {offsets = [0, 0, 0, 0, 0], sizes = [1, 8, 1, 8, 8], strides = [1, 1, 1, 1, 1]} : vector<1x8x2x8x8xbf16> to vector<1x8x1x8x8xbf16>
    %2 = vector.shape_cast %1 : vector<1x8x1x8x8xbf16> to vector<1x8x8x8xbf16>
    %3 = vector.extract_strided_slice %0 {offsets = [0, 0, 1, 0, 0], sizes = [1, 8, 1, 8, 8], strides = [1, 1, 1, 1, 1]} : vector<1x8x2x8x8xbf16> to vector<1x8x1x8x8xbf16>
    %4 = vector.shape_cast %3 : vector<1x8x1x8x8xbf16> to vector<1x8x8x8xbf16>
    %5 = arith.maximumf %2, %4 : vector<1x8x8x8xbf16>
    %6 = vector.extract_strided_slice %5 {offsets = [0, 0, 0, 0], sizes = [1, 8, 8, 4], strides = [1, 1, 1, 1]} : vector<1x8x8x8xbf16> to vector<1x8x8x4xbf16>
    %7 = vector.extract_strided_slice %5 {offsets = [0, 0, 0, 4], sizes = [1, 8, 8, 4], strides = [1, 1, 1, 1]} : vector<1x8x8x8xbf16> to vector<1x8x8x4xbf16>
    %8 = arith.maximumf %6, %7 : vector<1x8x8x4xbf16>
    %cst = arith.constant 0.000000e+00 : f32
    %9 = vector.broadcast %cst : f32 to vector<1x10x10x4xf32>
    %c0_4 = arith.constant 0 : index
    %c0_5 = arith.constant 0 : index
    %c0_6 = arith.constant 0 : index
    %c0_7 = arith.constant 0 : index
    %10 = vector.load %arg6[%c0_4, %c0_5, %c0_6, %c0_7] : memref<1x10x10x4xf32, #tpu.memory_space<vmem>>, vector<1x10x10x4xf32>
    tpu.vector_store %arg6[%c0_4, %c0_5, %c0_6, %c0_7], %9 {strides = array<i32>} : memref<1x10x10x4xf32, #tpu.memory_space<vmem>>, vector<1x10x10x4xf32>,
    %cst_8 = arith.constant 0.000000e+00 : f32
    %11 = vector.broadcast %cst_8 : f32 to vector<1x10x10x8xf32>
    %c0_9 = arith.constant 0 : index
    %c0_10 = arith.constant 0 : index
    %c0_11 = arith.constant 0 : index
    %c0_12 = arith.constant 0 : index
    %12 = vector.load %arg7[%c0_9, %c0_10, %c0_11, %c0_12] : memref<1x10x10x8xf32, #tpu.memory_space<vmem>>, vector<1x10x10x8xf32>
    tpu.vector_store %arg7[%c0_9, %c0_10, %c0_11, %c0_12], %11 {strides = array<i32>} : memref<1x10x10x8xf32, #tpu.memory_space<vmem>>, vector<1x10x10x8xf32>,
    %13 = arith.extf %8 : vector<1x8x8x4xbf16> to vector<1x8x8x4xf32>
    %c0_13 = arith.constant 0 : index
    %c1 = arith.constant 1 : index
    %c1_14 = arith.constant 1 : index
    %c0_15 = arith.constant 0 : index
    %14 = vector.load %arg6[%c0_13, %c1, %c1_14, %c0_15] : memref<1x10x10x4xf32, #tpu.memory_space<vmem>>, vector<1x8x8x4xf32>
    tpu.vector_store %arg6[%c0_13, %c1, %c1_14, %c0_15], %13 {strides = array<i32>} : memref<1x10x10x4xf32, #tpu.memory_space<vmem>>, vector<1x8x8x4xf32>,
    %c0_16 = arith.constant 0 : index
    %c0_17 = arith.constant 0 : index
    %c0_18 = arith.constant 0 : index
    %c0_19 = arith.constant 0 : index
    %15 = vector.load %arg6[%c0_16, %c0_17, %c0_18, %c0_19] : memref<1x10x10x4xf32, #tpu.memory_space<vmem>>, vector<1x8x8x4xf32>
    %c0_20 = arith.constant 0 : index
    %c0_21 = arith.constant 0 : index
    %c1_22 = arith.constant 1 : index
    %c0_23 = arith.constant 0 : index
    %16 = vector.load %arg6[%c0_20, %c0_21, %c1_22, %c0_23] : memref<1x10x10x4xf32, #tpu.memory_space<vmem>>, vector<1x8x8x4xf32>
    %c0_24 = arith.constant 0 : index
    %c0_25 = arith.constant 0 : index
    %c2 = arith.constant 2 : index
    %c0_26 = arith.constant 0 : index
    %17 = vector.load %arg6[%c0_24, %c0_25, %c2, %c0_26] : memref<1x10x10x4xf32, #tpu.memory_space<vmem>>, vector<1x8x8x4xf32>
    %c0_27 = arith.constant 0 : index
    %c1_28 = arith.constant 1 : index
    %c0_29 = arith.constant 0 : index
    %c0_30 = arith.constant 0 : index
    %18 = vector.load %arg6[%c0_27, %c1_28, %c0_29, %c0_30] : memref<1x10x10x4xf32, #tpu.memory_space<vmem>>, vector<1x8x8x4xf32>
    %c0_31 = arith.constant 0 : index
    %c1_32 = arith.constant 1 : index
    %c1_33 = arith.constant 1 : index
    %c0_34 = arith.constant 0 : index
    %19 = vector.load %arg6[%c0_31, %c1_32, %c1_33, %c0_34] : memref<1x10x10x4xf32, #tpu.memory_space<vmem>>, vector<1x8x8x4xf32>
    %c0_35 = arith.constant 0 : index
    %c1_36 = arith.constant 1 : index
    %c2_37 = arith.constant 2 : index
    %c0_38 = arith.constant 0 : index
    %20 = vector.load %arg6[%c0_35, %c1_36, %c2_37, %c0_38] : memref<1x10x10x4xf32, #tpu.memory_space<vmem>>, vector<1x8x8x4xf32>
    %c0_39 = arith.constant 0 : index
    %c2_40 = arith.constant 2 : index
    %c0_41 = arith.constant 0 : index
    %c0_42 = arith.constant 0 : index
    %21 = vector.load %arg6[%c0_39, %c2_40, %c0_41, %c0_42] : memref<1x10x10x4xf32, #tpu.memory_space<vmem>>, vector<1x8x8x4xf32>
    %c0_43 = arith.constant 0 : index
    %c2_44 = arith.constant 2 : index
    %c1_45 = arith.constant 1 : index
    %c0_46 = arith.constant 0 : index
    %22 = vector.load %arg6[%c0_43, %c2_44, %c1_45, %c0_46] : memref<1x10x10x4xf32, #tpu.memory_space<vmem>>, vector<1x8x8x4xf32>
    %c0_47 = arith.constant 0 : index
    %c2_48 = arith.constant 2 : index
    %c2_49 = arith.constant 2 : index
    %c0_50 = arith.constant 0 : index
    %23 = vector.load %arg6[%c0_47, %c2_48, %c2_49, %c0_50] : memref<1x10x10x4xf32, #tpu.memory_space<vmem>>, vector<1x8x8x4xf32>
    %24 = tpu.concatenate %15, %16, %17, %18, %19, %20, %21, %22, %23 in 3 : vector<1x8x8x4xf32>, vector<1x8x8x4xf32>, vector<1x8x8x4xf32>, vector<1x8x8x4xf32>, vector<1x8x8x4xf32>, vector<1x8x8x4xf32>, vector<1x8x8x4xf32>, vector<1x8x8x4xf32>, vector<1x8x8x4xf32> -> vector<1x8x8x36xf32>
    %25 = vector.shape_cast %24 : vector<1x8x8x36xf32> to vector<64x36xf32>
    %26 = arith.truncf %25 : vector<64x36xf32> to vector<64x36xbf16>
    %c0_51 = arith.constant 0 : index
    %c0_52 = arith.constant 0 : index
    %27 = vector.load %arg2[%c0_51, %c0_52] : memref<36x8xbf16, #tpu.memory_space<vmem>>, vector<36x8xbf16>
    %cst_53 = arith.constant dense<0.000000e+00> : vector<64x8xf32>
    %28 = tpu.matmul %26, %27, %cst_53 {dimension_numbers = #tpu.dot_dimension_numbers<[1], [0], [0], [1], [0, 0, 1, 1], [], []>} : vector<64x36xbf16>, vector<36x8xbf16>, vector<64x8xf32> -> vector<64x8xf32>
    %29 = vector.shape_cast %28 : vector<64x8xf32> to vector<1x64x8xf32>
    %cst_54 = arith.constant dense<0.000000e+00> : vector<1x8xf32>
    %30 = vector.multi_reduction <add>, %29, %cst_54 [1] : vector<1x64x8xf32> to vector<1x8xf32>
    %31 = vector.shape_cast %30 : vector<1x8xf32> to vector<1x1x8xf32>
    %cst_55 = arith.constant 1.562500e-02 : f32
    %32 = vector.broadcast %cst_55 : f32 to vector<1x1x8xf32>
    %33 = arith.mulf %31, %32 : vector<1x1x8xf32>
    %34 = arith.mulf %29, %29 : vector<1x64x8xf32>
    %cst_56 = arith.constant dense<0.000000e+00> : vector<1x8xf32>
    %35 = vector.multi_reduction <add>, %34, %cst_56 [1] : vector<1x64x8xf32> to vector<1x8xf32>
    %36 = vector.shape_cast %35 : vector<1x8xf32> to vector<1x1x8xf32>
    %cst_57 = arith.constant 1.562500e-02 : f32
    %37 = vector.broadcast %cst_57 : f32 to vector<1x1x8xf32>
    %38 = arith.mulf %36, %37 : vector<1x1x8xf32>
    %39 = arith.mulf %33, %33 : vector<1x1x8xf32>
    %40 = arith.subf %38, %39 : vector<1x1x8xf32>
    %cst_58 = arith.constant 0.000000e+00 : f32
    %41 = vector.broadcast %cst_58 : f32 to vector<1x1x8xf32>
    %42 = arith.maximumf %40, %41 : vector<1x1x8xf32>
    %43 = vector.broadcast %33 : vector<1x1x8xf32> to vector<1x64x8xf32>
    %44 = arith.subf %29, %43 : vector<1x64x8xf32>
    %cst_59 = arith.constant 9.99999974E-6 : f32
    %45 = vector.broadcast %cst_59 : f32 to vector<1x1x8xf32>
    %46 = arith.addf %42, %45 : vector<1x1x8xf32>
    %47 = math.rsqrt %46 : vector<1x1x8xf32>
    %48 = vector.broadcast %47 : vector<1x1x8xf32> to vector<1x64x8xf32>
    %49 = arith.mulf %44, %48 : vector<1x64x8xf32>
    %50 = vector.shape_cast %49 : vector<1x64x8xf32> to vector<1x8x8x8xf32>
    %c0_60 = arith.constant 0 : index
    %c1_61 = arith.constant 1 : index
    %c1_62 = arith.constant 1 : index
    %c0_63 = arith.constant 0 : index
    %51 = vector.load %arg7[%c0_60, %c1_61, %c1_62, %c0_63] : memref<1x10x10x8xf32, #tpu.memory_space<vmem>>, vector<1x8x8x8xf32>
    tpu.vector_store %arg7[%c0_60, %c1_61, %c1_62, %c0_63], %50 {strides = array<i32>} : memref<1x10x10x8xf32, #tpu.memory_space<vmem>>, vector<1x8x8x8xf32>,
    %c0_64 = arith.constant 0 : index
    %c0_65 = arith.constant 0 : index
    %c0_66 = arith.constant 0 : index
    %c0_67 = arith.constant 0 : index
    %52 = vector.load %arg7[%c0_64, %c0_65, %c0_66, %c0_67] : memref<1x10x10x8xf32, #tpu.memory_space<vmem>>, vector<1x8x8x8xf32>
    %c0_68 = arith.constant 0 : index
    %c0_69 = arith.constant 0 : index
    %c1_70 = arith.constant 1 : index
    %c0_71 = arith.constant 0 : index
    %53 = vector.load %arg7[%c0_68, %c0_69, %c1_70, %c0_71] : memref<1x10x10x8xf32, #tpu.memory_space<vmem>>, vector<1x8x8x8xf32>
    %c0_72 = arith.constant 0 : index
    %c0_73 = arith.constant 0 : index
    %c2_74 = arith.constant 2 : index
    %c0_75 = arith.constant 0 : index
    %54 = vector.load %arg7[%c0_72, %c0_73, %c2_74, %c0_75] : memref<1x10x10x8xf32, #tpu.memory_space<vmem>>, vector<1x8x8x8xf32>
    %c0_76 = arith.constant 0 : index
    %c1_77 = arith.constant 1 : index
    %c0_78 = arith.constant 0 : index
    %c0_79 = arith.constant 0 : index
    %55 = vector.load %arg7[%c0_76, %c1_77, %c0_78, %c0_79] : memref<1x10x10x8xf32, #tpu.memory_space<vmem>>, vector<1x8x8x8xf32>
    %c0_80 = arith.constant 0 : index
    %c1_81 = arith.constant 1 : index
    %c1_82 = arith.constant 1 : index
    %c0_83 = arith.constant 0 : index
    %56 = vector.load %arg7[%c0_80, %c1_81, %c1_82, %c0_83] : memref<1x10x10x8xf32, #tpu.memory_space<vmem>>, vector<1x8x8x8xf32>
    %c0_84 = arith.constant 0 : index
    %c1_85 = arith.constant 1 : index
    %c2_86 = arith.constant 2 : index
    %c0_87 = arith.constant 0 : index
    %57 = vector.load %arg7[%c0_84, %c1_85, %c2_86, %c0_87] : memref<1x10x10x8xf32, #tpu.memory_space<vmem>>, vector<1x8x8x8xf32>
    %c0_88 = arith.constant 0 : index
    %c2_89 = arith.constant 2 : index
    %c0_90 = arith.constant 0 : index
    %c0_91 = arith.constant 0 : index
    %58 = vector.load %arg7[%c0_88, %c2_89, %c0_90, %c0_91] : memref<1x10x10x8xf32, #tpu.memory_space<vmem>>, vector<1x8x8x8xf32>
    %c0_92 = arith.constant 0 : index
    %c2_93 = arith.constant 2 : index
    %c1_94 = arith.constant 1 : index
    %c0_95 = arith.constant 0 : index
    %59 = vector.load %arg7[%c0_92, %c2_93, %c1_94, %c0_95] : memref<1x10x10x8xf32, #tpu.memory_space<vmem>>, vector<1x8x8x8xf32>
    %c0_96 = arith.constant 0 : index
    %c2_97 = arith.constant 2 : index
    %c2_98 = arith.constant 2 : index
    %c0_99 = arith.constant 0 : index
    %60 = vector.load %arg7[%c0_96, %c2_97, %c2_98, %c0_99] : memref<1x10x10x8xf32, #tpu.memory_space<vmem>>, vector<1x8x8x8xf32>
    %61 = tpu.concatenate %52, %53, %54, %55, %56, %57, %58, %59, %60 in 3 : vector<1x8x8x8xf32>, vector<1x8x8x8xf32>, vector<1x8x8x8xf32>, vector<1x8x8x8xf32>, vector<1x8x8x8xf32>, vector<1x8x8x8xf32>, vector<1x8x8x8xf32>, vector<1x8x8x8xf32>, vector<1x8x8x8xf32> -> vector<1x8x8x72xf32>
    %62 = vector.shape_cast %61 : vector<1x8x8x72xf32> to vector<64x72xf32>
    %63 = arith.truncf %62 : vector<64x72xf32> to vector<64x72xbf16>
    %c0_100 = arith.constant 0 : index
    %c0_101 = arith.constant 0 : index
    %64 = vector.load %arg3[%c0_100, %c0_101] : memref<72x8xbf16, #tpu.memory_space<vmem>>, vector<72x8xbf16>
    %cst_102 = arith.constant dense<0.000000e+00> : vector<64x8xf32>
    %65 = tpu.matmul %63, %64, %cst_102 {dimension_numbers = #tpu.dot_dimension_numbers<[1], [0], [0], [1], [0, 0, 1, 1], [], []>} : vector<64x72xbf16>, vector<72x8xbf16>, vector<64x8xf32> -> vector<64x8xf32>
    %66 = vector.shape_cast %65 : vector<64x8xf32> to vector<1x64x8xf32>
    %cst_103 = arith.constant dense<0.000000e+00> : vector<1x8xf32>
    %67 = vector.multi_reduction <add>, %66, %cst_103 [1] : vector<1x64x8xf32> to vector<1x8xf32>
    %68 = vector.shape_cast %67 : vector<1x8xf32> to vector<1x1x8xf32>
    %cst_104 = arith.constant 1.562500e-02 : f32
    %69 = vector.broadcast %cst_104 : f32 to vector<1x1x8xf32>
    %70 = arith.mulf %68, %69 : vector<1x1x8xf32>
    %71 = arith.mulf %66, %66 : vector<1x64x8xf32>
    %cst_105 = arith.constant dense<0.000000e+00> : vector<1x8xf32>
    %72 = vector.multi_reduction <add>, %71, %cst_105 [1] : vector<1x64x8xf32> to vector<1x8xf32>
    %73 = vector.shape_cast %72 : vector<1x8xf32> to vector<1x1x8xf32>
    %cst_106 = arith.constant 1.562500e-02 : f32
    %74 = vector.broadcast %cst_106 : f32 to vector<1x1x8xf32>
    %75 = arith.mulf %73, %74 : vector<1x1x8xf32>
    %76 = arith.mulf %70, %70 : vector<1x1x8xf32>
    %77 = arith.subf %75, %76 : vector<1x1x8xf32>
    %cst_107 = arith.constant 0.000000e+00 : f32
    %78 = vector.broadcast %cst_107 : f32 to vector<1x1x8xf32>
    %79 = arith.maximumf %77, %78 : vector<1x1x8xf32>
    %80 = vector.broadcast %70 : vector<1x1x8xf32> to vector<1x64x8xf32>
    %81 = arith.subf %66, %80 : vector<1x64x8xf32>
    %cst_108 = arith.constant 9.99999974E-6 : f32
    %82 = vector.broadcast %cst_108 : f32 to vector<1x1x8xf32>
    %83 = arith.addf %79, %82 : vector<1x1x8xf32>
    %84 = math.rsqrt %83 : vector<1x1x8xf32>
    %85 = vector.broadcast %84 : vector<1x1x8xf32> to vector<1x64x8xf32>
    %86 = arith.mulf %81, %85 : vector<1x64x8xf32>
    %cst_109 = arith.constant 0.000000e+00 : f32
    %87 = vector.broadcast %cst_109 : f32 to vector<1x64x8xf32>
    %88 = arith.cmpf oge, %86, %87 : vector<1x64x8xf32>
    %cst_110 = arith.constant 0.00999999977 : f32
    %89 = vector.broadcast %cst_110 : f32 to vector<1x64x8xf32>
    %90 = arith.mulf %89, %86 : vector<1x64x8xf32>
    %91 = arith.select %88, %86, %90 : vector<1x64x8xi1>, vector<1x64x8xf32>
    %92 = vector.shape_cast %91 : vector<1x64x8xf32> to vector<1x8x8x8xf32>
    %c0_111 = arith.constant 0 : index
    %c1_112 = arith.constant 1 : index
    %c1_113 = arith.constant 1 : index
    %c0_114 = arith.constant 0 : index
    %93 = vector.load %arg7[%c0_111, %c1_112, %c1_113, %c0_114] : memref<1x10x10x8xf32, #tpu.memory_space<vmem>>, vector<1x8x8x8xf32>
    tpu.vector_store %arg7[%c0_111, %c1_112, %c1_113, %c0_114], %92 {strides = array<i32>} : memref<1x10x10x8xf32, #tpu.memory_space<vmem>>, vector<1x8x8x8xf32>,
    %c0_115 = arith.constant 0 : index
    %c0_116 = arith.constant 0 : index
    %c0_117 = arith.constant 0 : index
    %c0_118 = arith.constant 0 : index
    %94 = vector.load %arg7[%c0_115, %c0_116, %c0_117, %c0_118] : memref<1x10x10x8xf32, #tpu.memory_space<vmem>>, vector<1x8x8x8xf32>
    %c0_119 = arith.constant 0 : index
    %c0_120 = arith.constant 0 : index
    %c1_121 = arith.constant 1 : index
    %c0_122 = arith.constant 0 : index
    %95 = vector.load %arg7[%c0_119, %c0_120, %c1_121, %c0_122] : memref<1x10x10x8xf32, #tpu.memory_space<vmem>>, vector<1x8x8x8xf32>
    %c0_123 = arith.constant 0 : index
    %c0_124 = arith.constant 0 : index
    %c2_125 = arith.constant 2 : index
    %c0_126 = arith.constant 0 : index
    %96 = vector.load %arg7[%c0_123, %c0_124, %c2_125, %c0_126] : memref<1x10x10x8xf32, #tpu.memory_space<vmem>>, vector<1x8x8x8xf32>
    %c0_127 = arith.constant 0 : index
    %c1_128 = arith.constant 1 : index
    %c0_129 = arith.constant 0 : index
    %c0_130 = arith.constant 0 : index
    %97 = vector.load %arg7[%c0_127, %c1_128, %c0_129, %c0_130] : memref<1x10x10x8xf32, #tpu.memory_space<vmem>>, vector<1x8x8x8xf32>
    %c0_131 = arith.constant 0 : index
    %c1_132 = arith.constant 1 : index
    %c1_133 = arith.constant 1 : index
    %c0_134 = arith.constant 0 : index
    %98 = vector.load %arg7[%c0_131, %c1_132, %c1_133, %c0_134] : memref<1x10x10x8xf32, #tpu.memory_space<vmem>>, vector<1x8x8x8xf32>
    %c0_135 = arith.constant 0 : index
    %c1_136 = arith.constant 1 : index
    %c2_137 = arith.constant 2 : index
    %c0_138 = arith.constant 0 : index
    %99 = vector.load %arg7[%c0_135, %c1_136, %c2_137, %c0_138] : memref<1x10x10x8xf32, #tpu.memory_space<vmem>>, vector<1x8x8x8xf32>
    %c0_139 = arith.constant 0 : index
    %c2_140 = arith.constant 2 : index
    %c0_141 = arith.constant 0 : index
    %c0_142 = arith.constant 0 : index
    %100 = vector.load %arg7[%c0_139, %c2_140, %c0_141, %c0_142] : memref<1x10x10x8xf32, #tpu.memory_space<vmem>>, vector<1x8x8x8xf32>
    %c0_143 = arith.constant 0 : index
    %c2_144 = arith.constant 2 : index
    %c1_145 = arith.constant 1 : index
    %c0_146 = arith.constant 0 : index
    %101 = vector.load %arg7[%c0_143, %c2_144, %c1_145, %c0_146] : memref<1x10x10x8xf32, #tpu.memory_space<vmem>>, vector<1x8x8x8xf32>
    %c0_147 = arith.constant 0 : index
    %c2_148 = arith.constant 2 : index
    %c2_149 = arith.constant 2 : index
    %c0_150 = arith.constant 0 : index
    %102 = vector.load %arg7[%c0_147, %c2_148, %c2_149, %c0_150] : memref<1x10x10x8xf32, #tpu.memory_space<vmem>>, vector<1x8x8x8xf32>
    %103 = tpu.concatenate %94, %95, %96, %97, %98, %99, %100, %101, %102 in 3 : vector<1x8x8x8xf32>, vector<1x8x8x8xf32>, vector<1x8x8x8xf32>, vector<1x8x8x8xf32>, vector<1x8x8x8xf32>, vector<1x8x8x8xf32>, vector<1x8x8x8xf32>, vector<1x8x8x8xf32>, vector<1x8x8x8xf32> -> vector<1x8x8x72xf32>
    %104 = vector.shape_cast %103 : vector<1x8x8x72xf32> to vector<64x72xf32>
    %105 = arith.truncf %104 : vector<64x72xf32> to vector<64x72xbf16>
    %c0_151 = arith.constant 0 : index
    %c0_152 = arith.constant 0 : index
    %106 = vector.load %arg4[%c0_151, %c0_152] : memref<72x8xbf16, #tpu.memory_space<vmem>>, vector<72x8xbf16>
    %cst_153 = arith.constant dense<0.000000e+00> : vector<64x8xf32>
    %107 = tpu.matmul %105, %106, %cst_153 {dimension_numbers = #tpu.dot_dimension_numbers<[1], [0], [0], [1], [0, 0, 1, 1], [], []>} : vector<64x72xbf16>, vector<72x8xbf16>, vector<64x8xf32> -> vector<64x8xf32>
    %108 = vector.shape_cast %107 : vector<64x8xf32> to vector<1x64x8xf32>
    %cst_154 = arith.constant dense<0.000000e+00> : vector<1x8xf32>
    %109 = vector.multi_reduction <add>, %108, %cst_154 [1] : vector<1x64x8xf32> to vector<1x8xf32>
    %110 = vector.shape_cast %109 : vector<1x8xf32> to vector<1x1x8xf32>
    %cst_155 = arith.constant 1.562500e-02 : f32
    %111 = vector.broadcast %cst_155 : f32 to vector<1x1x8xf32>
    %112 = arith.mulf %110, %111 : vector<1x1x8xf32>
    %113 = arith.mulf %108, %108 : vector<1x64x8xf32>
    %cst_156 = arith.constant dense<0.000000e+00> : vector<1x8xf32>
    %114 = vector.multi_reduction <add>, %113, %cst_156 [1] : vector<1x64x8xf32> to vector<1x8xf32>
    %115 = vector.shape_cast %114 : vector<1x8xf32> to vector<1x1x8xf32>
    %cst_157 = arith.constant 1.562500e-02 : f32
    %116 = vector.broadcast %cst_157 : f32 to vector<1x1x8xf32>
    %117 = arith.mulf %115, %116 : vector<1x1x8xf32>
    %118 = arith.mulf %112, %112 : vector<1x1x8xf32>
    %119 = arith.subf %117, %118 : vector<1x1x8xf32>
    %cst_158 = arith.constant 0.000000e+00 : f32
    %120 = vector.broadcast %cst_158 : f32 to vector<1x1x8xf32>
    %121 = arith.maximumf %119, %120 : vector<1x1x8xf32>
    %122 = vector.broadcast %112 : vector<1x1x8xf32> to vector<1x64x8xf32>
    %123 = arith.subf %108, %122 : vector<1x64x8xf32>
    %cst_159 = arith.constant 9.99999974E-6 : f32
    %124 = vector.broadcast %cst_159 : f32 to vector<1x1x8xf32>
    %125 = arith.addf %121, %124 : vector<1x1x8xf32>
    %126 = math.rsqrt %125 : vector<1x1x8xf32>
    %127 = vector.broadcast %126 : vector<1x1x8xf32> to vector<1x64x8xf32>
    %128 = arith.mulf %123, %127 : vector<1x64x8xf32>
    %cst_160 = arith.constant 0.000000e+00 : f32
    %129 = vector.broadcast %cst_160 : f32 to vector<1x64x8xf32>
    %130 = arith.cmpf oge, %128, %129 : vector<1x64x8xf32>
    %cst_161 = arith.constant 0.00999999977 : f32
    %131 = vector.broadcast %cst_161 : f32 to vector<1x64x8xf32>
    %132 = arith.mulf %131, %128 : vector<1x64x8xf32>
    %133 = arith.select %130, %128, %132 : vector<1x64x8xi1>, vector<1x64x8xf32>
    %c0_162 = arith.constant 0 : index
    %c0_163 = arith.constant 0 : index
    %c0_164 = arith.constant 0 : index
    %134 = vector.load %arg5[%c0_162, %c0_163, %c0_164] : memref<1x64x8xf32, #tpu.memory_space<vmem>>, vector<1x64x8xf32>
    tpu.vector_store %arg5[%c0_162, %c0_163, %c0_164], %133 {strides = array<i32>} : memref<1x64x8xf32, #tpu.memory_space<vmem>>, vector<1x64x8xf32>,
    return
  }
  func.func @transform_0(%arg0: i32) -> (i32, i32, i32, i32, i32) {
    %c0_i32 = arith.constant 0 : i32
    %c0_i32_0 = arith.constant 0 : i32
    %c0_i32_1 = arith.constant 0 : i32
    %c0_i32_2 = arith.constant 0 : i32
    %c0_i32_3 = arith.constant 0 : i32
    return %arg0, %c0_i32, %c0_i32_0, %c0_i32_1, %c0_i32_2 : i32, i32, i32, i32, i32
  }
  func.func @transform_1(%arg0: i32) -> (i32, i32) {
    %c0_i32 = arith.constant 0 : i32
    %c0_i32_0 = arith.constant 0 : i32
    %c0_i32_1 = arith.constant 0 : i32
    return %c0_i32, %c0_i32_0 : i32, i32
  }
  func.func @transform_2(%arg0: i32) -> (i32, i32) {
    %c0_i32 = arith.constant 0 : i32
    %c0_i32_0 = arith.constant 0 : i32
    %c0_i32_1 = arith.constant 0 : i32
    return %c0_i32, %c0_i32_0 : i32, i32
  }
  func.func @transform_3(%arg0: i32) -> (i32, i32) {
    %c0_i32 = arith.constant 0 : i32
    %c0_i32_0 = arith.constant 0 : i32
    %c0_i32_1 = arith.constant 0 : i32
    return %c0_i32, %c0_i32_0 : i32, i32
  }
  func.func @transform_4(%arg0: i32) -> (i32, i32, i32) {
    %c0_i32 = arith.constant 0 : i32
    %c0_i32_0 = arith.constant 0 : i32
    %c0_i32_1 = arith.constant 0 : i32
    return %arg0, %c0_i32, %c0_i32_0 : i32, i32, i32
  }
}

</mosaic_0001>

<llo_original>
// kernel: tpu_custom_call.1
$region0: #{tpu_custom_call.1}
  #allocation0 [shape = 'u32[]', space=smem, size = 0x4, offset = 0x4, fixed_abs, tag = 'smem constant byte address 0x4 - core index']
  #allocation1 [shape = 'u32[144,128]{1,0:T(1,128)}', space=vmem, size = 0x12000, scoped, tag = 'internal scratch']
  #allocation2 [shape = 'f32[1,10,10,4]{3,2,1,0:T(8,128)}', space=vmem, size = 0x14000, scoped, tag = 'scratch operand']
  #allocation3 [shape = 'f32[1,10,10,8]{3,2,1,0:T(8,128)}', space=vmem, size = 0x14000, scoped, tag = 'scratch operand']
  %s0 = inlined_call_operand.hbm [shape: bf16[2,8,2,8,8], index: 0, kind: input, shape index: {}]
  %s1 = inlined_call_operand.vmem [shape: bf16[36,8], index: 1, kind: input, shape index: {}]
  %s2 = inlined_call_operand.vmem [shape: bf16[72,8], index: 2, kind: input, shape index: {}]
  %s3 = inlined_call_operand.vmem [shape: bf16[72,8], index: 3, kind: input, shape index: {}]
  %s4 = inlined_call_operand.vmem [shape: f32[2,64,8], index: 4, kind: output, shape index: {}]
  %s5 = sld [smem:[#allocation0]]
  $region53: #{tpu_custom_call.1} parent=0
    _
  %s7 = ssub.s32 1, %s5
  %s8 = scalar_select 0, %s7, %s5
  $region1: #{tpu_custom_call.1} parent=0
    #allocation4 [shape = 'u8[65536]{0}', space=vmem, size = 0x10000, scoped, tag = 'input window, operand 0']
    #allocation5 [shape = 's32[2]{0}', space=sflag, size = 0x8, scoped, tag = 'scoped memory for tpu_custom_call.1']
    %9 = vsyncpa [#allocation5], 0
    %s10 = scalar_lea.sflag [#allocation5], 1
    %11 = vsyncpa %s10, 0
    loop: start=0, step=1, limit=4
    $region2: #{tpu_custom_call.1} parent=1 // loop_pre_header
      _
    $region3: #{tpu_custom_call.1} parent=1 // loop_header
      %s13 = sphi 0, %s17
      %p14 = scmp.ge.s32.totalorder %s13, 4
      %s23 = sphi 0, %s25
      %s26 = sphi 0, %s23
      %s27 = sphi 0, %s26
      %s43 = sphi 0, %s27
      %s47 = sphi 0, %s47
      %s49 = sphi 0, %s47
      %s50 = sphi 0, %s49
      %s64 = sphi 0, %s50
      %s68 = sphi 0, %s68
      %s70 = sphi 0, %s68
      %s71 = sphi 0, %s70
      %s85 = sphi 0, %s71
      %s89 = sphi 0, %s89
      %s91 = sphi 0, %s89
      %s92 = sphi 0, %s91
      %s106 = sphi 0, %s92
      %s112 = sphi 0, %s114
      %s115 = sphi 0, %s112
      %s116 = sphi 0, %s115
      %s132 = sphi 0, %s116
    $region4: #{tpu_custom_call.1} parent=1 // loop_header_branch
      %16 = sbr.rel (%p14) target = $region8
    $region5: #{tpu_custom_call.1} parent=1 // loop_body
      %s18 = ssub.s32 %s13, 1
      %s19 = ssub.s32 %s13, 2
      %s20 = sadd.s32 %s13, 1
      %s21 = ssub.s32 %s13, %s20
      %p22 = scmp.eq.s32.totalorder %s21, 0
      %s24 = sadd.s32 %s23, 1
      %s25 = scalar_select %p22, %s23, %s24
      %p28 = pneg %p22
      %p29 = scmp.eq.s32.totalorder %s13, 1
      %p30 = por %p28, %p29
      %p31 = scmp.ne.s32.totalorder %s23, %s26
      %p32 = scmp.eq.s32.totalorder %s13, 0
      %p33 = por %p31, %p32
      %p34 = scmp.ne.s32.totalorder %s23, %s26
      %p35 = scmp.eq.s32.totalorder %s18, 1
      %p36 = por %p34, %p35
      %p37 = scmp.ne.s32.totalorder %s26, %s27
      %p38 = scmp.eq.s32.totalorder %s18, 0
      %p39 = por %p37, %p38
      %p40 = scmp.ne.s32.totalorder %s26, %s27
      %p41 = scmp.eq.s32.totalorder %s19, 1
      %p42 = por %p40, %p41
      %p44 = scmp.ne.s32.totalorder %s27, %s43
      %p45 = scmp.eq.s32.totalorder %s19, 0
      %p46 = por %p44, %p45
      %s48 = sadd.s32 %s47, 1
      %p51 = scmp.eq.s32.totalorder %s13, 1
      %p52 = scmp.ne.s32.totalorder %s47, %s49
      %p53 = scmp.eq.s32.totalorder %s13, 0
      %p54 = por %p52, %p53
      %p55 = scmp.ne.s32.totalorder %s47, %s49
      %p56 = scmp.eq.s32.totalorder %s18, 1
      %p57 = por %p55, %p56
      %p58 = scmp.ne.s32.totalorder %s49, %s50
      %p59 = scmp.eq.s32.totalorder %s18, 0
      %p60 = por %p58, %p59
      %p61 = scmp.ne.s32.totalorder %s49, %s50
      %p62 = scmp.eq.s32.totalorder %s19, 1
      %p63 = por %p61, %p62
      %p65 = scmp.ne.s32.totalorder %s50, %s64
      %p66 = scmp.eq.s32.totalorder %s19, 0
      %p67 = por %p65, %p66
      %s69 = sadd.s32 %s68, 1
      %p72 = scmp.eq.s32.totalorder %s13, 1
      %p73 = scmp.ne.s32.totalorder %s68, %s70
      %p74 = scmp.eq.s32.totalorder %s13, 0
      %p75 = por %p73, %p74
      %p76 = scmp.ne.s32.totalorder %s68, %s70
      %p77 = scmp.eq.s32.totalorder %s18, 1
      %p78 = por %p76, %p77
      %p79 = scmp.ne.s32.totalorder %s70, %s71
      %p80 = scmp.eq.s32.totalorder %s18, 0
      %p81 = por %p79, %p80
      %p82 = scmp.ne.s32.totalorder %s70, %s71
      %p83 = scmp.eq.s32.totalorder %s19, 1
      %p84 = por %p82, %p83
      %p86 = scmp.ne.s32.totalorder %s71, %s85
      %p87 = scmp.eq.s32.totalorder %s19, 0
      %p88 = por %p86, %p87
      %s90 = sadd.s32 %s89, 1
      %p93 = scmp.eq.s32.totalorder %s13, 1
      %p94 = scmp.ne.s32.totalorder %s89, %s91
      %p95 = scmp.eq.s32.totalorder %s13, 0
      %p96 = por %p94, %p95
      %p97 = scmp.ne.s32.totalorder %s89, %s91
      %p98 = scmp.eq.s32.totalorder %s18, 1
      %p99 = por %p97, %p98
      %p100 = scmp.ne.s32.totalorder %s91, %s92
      %p101 = scmp.eq.s32.totalorder %s18, 0
      %p102 = por %p100, %p101
      %p103 = scmp.ne.s32.totalorder %s91, %s92
      %p104 = scmp.eq.s32.totalorder %s19, 1
      %p105 = por %p103, %p104
      %p107 = scmp.ne.s32.totalorder %s92, %s106
      %p108 = scmp.eq.s32.totalorder %s19, 0
      %p109 = por %p107, %p108
      %s110 = ssub.s32 %s13, %s20
      %p111 = scmp.eq.s32.totalorder %s110, 0
      %s113 = sadd.s32 %s112, 1
      %s114 = scalar_select %p111, %s112, %s113
      %p117 = pneg %p111
      %p118 = scmp.eq.s32.totalorder %s13, 1
      %p119 = por %p117, %p118
      %p120 = scmp.ne.s32.totalorder %s112, %s115
      %p121 = scmp.eq.s32.totalorder %s13, 0
      %p122 = por %p120, %p121
      %p123 = scmp.ne.s32.totalorder %s112, %s115
      %p124 = scmp.eq.s32.totalorder %s18, 1
      %p125 = por %p123, %p124
      %p126 = scmp.ne.s32.totalorder %s115, %s116
      %p127 = scmp.eq.s32.totalorder %s18, 0
      %p128 = por %p126, %p127
      %p129 = scmp.ne.s32.totalorder %s115, %s116
      %p130 = scmp.eq.s32.totalorder %s19, 1
      %p131 = por %p129, %p130
      %p133 = scmp.ne.s32.totalorder %s116, %s132
      %p134 = scmp.eq.s32.totalorder %s19, 0
      %p135 = por %p133, %p134
      %p136 = scmp.le.s32.totalorder 1, %s13
      %p137 = scmp.lt.s32.totalorder %s13, 3
      %p138 = pnand %p136, %p137
      %p139 = pneg %p138
      // Predicated region
      $region9: #{tpu_custom_call.1} parent=5 // pred_check
        _
      $region10: #{tpu_custom_call.1} parent=5 // pred_check_branch
        %141 = sbr.rel (%p138) target = $region12
      $region11: #{tpu_custom_call.1} parent=5 // pred_region
        %s142 = ssub.s32 %s13, 1
        // Predicated region
        $region13: #{tpu_custom_call.1} parent=11 // pred_check
          %p143 = pneg %p60
        $region14: #{tpu_custom_call.1} parent=11 // pred_check_branch
          %145 = sbr.rel (%p143) target = $region16
        $region15: #{tpu_custom_call.1} parent=11 // pred_region
          _
        $region16: #{tpu_custom_call.1} parent=11 // pred_fallthru
          _
        // Predicated region
        $region17: #{tpu_custom_call.1} parent=11 // pred_check
          %p146 = pneg %p81
        $region18: #{tpu_custom_call.1} parent=11 // pred_check_branch
          %148 = sbr.rel (%p146) target = $region20
        $region19: #{tpu_custom_call.1} parent=11 // pred_region
          _
        $region20: #{tpu_custom_call.1} parent=11 // pred_fallthru
          _
        // Predicated region
        $region21: #{tpu_custom_call.1} parent=11 // pred_check
          %p149 = pneg %p102
        $region22: #{tpu_custom_call.1} parent=11 // pred_check_branch
          %151 = sbr.rel (%p149) target = $region24
        $region23: #{tpu_custom_call.1} parent=11 // pred_region
          _
        $region24: #{tpu_custom_call.1} parent=11 // pred_fallthru
          _
      $region12: #{tpu_custom_call.1} parent=5 // pred_fallthru
        _
      %p152 = scmp.lt.s32.totalorder %s13, 2
      // Predicated region
      $region25: #{tpu_custom_call.1} parent=5 // pred_check
        %p153 = pneg %p152
      $region26: #{tpu_custom_call.1} parent=5 // pred_check_branch
        %155 = sbr.rel (%p153) target = $region28
      $region27: #{tpu_custom_call.1} parent=5 // pred_region
        // Predicated region
        $region29: #{tpu_custom_call.1} parent=27 // pred_check
          %p156 = pneg %p33
        $region30: #{tpu_custom_call.1} parent=27 // pred_check_branch
          %158 = sbr.rel (%p156) target = $region32
        $region31: #{tpu_custom_call.1} parent=27 // pred_region
          %s159 = sand.u32 %s23, 1
          %s160 = scalar_lea.sflag [#allocation5], %s159
          %s161 = sand.u32 %s23, 1
          %s162 = smul.addr %s161, 64
          %s163 = scalar_lea.vmem [#allocation4], %s162
          %s165 = ssub.s32 1024, 1024
          %166 = vsyncadd %s160, %s165
          %s167 = smul.addr %s13, 16
          %s168 = smul.addr %s167, 64
          %s169 = scalar_lea.hbm %s0, %s168
          %s170 = sshll.u32 %s163, 4
          %s171 = int_to_ptr.vmem [resolvable:$true] %s170
          %176 = dma.hbm_to_vmem [thread:$0]  %s169, 1024, %s171, %s160, 64, 64, 4
        $region32: #{tpu_custom_call.1} parent=27 // pred_fallthru
          _
      $region28: #{tpu_custom_call.1} parent=5 // pred_fallthru
        _
      %p177 = scmp.le.s32.totalorder 1, %s13
      %p178 = scmp.lt.s32.totalorder %s13, 3
      %p179 = pnand %p177, %p178
      %p180 = pneg %p179
      // Predicated region
      $region33: #{tpu_custom_call.1} parent=5 // pred_check
        _
      $region34: #{tpu_custom_call.1} parent=5 // pred_check_branch
        %182 = sbr.rel (%p179) target = $region36
      $region35: #{tpu_custom_call.1} parent=5 // pred_region
        %s183 = ssub.s32 %s13, 1
        %s184 = sand.u32 %s26, 1
        %s185 = scalar_lea.sflag [#allocation5], %s184
        %s186 = sand.u32 %s26, 1
        %s187 = smul.addr %s186, 64
        %s188 = scalar_lea.vmem [#allocation4], %s187
        // Predicated region
        $region37: #{tpu_custom_call.1} parent=35 // pred_check
          %p189 = pneg %p39
        $region38: #{tpu_custom_call.1} parent=35 // pred_check_branch
          %191 = sbr.rel (%p189) target = $region40
        $region39: #{tpu_custom_call.1} parent=35 // pred_region
          %192 = dma.done %s185, 1024
        $region40: #{tpu_custom_call.1} parent=35 // pred_fallthru
          _
        %s193 = sand.u32 %s26, 1
        %s194 = scalar_lea.sflag [#allocation5], %s193
        %s195 = sand.u32 %s26, 1
        %s196 = smul.addr %s195, 64
        %s197 = scalar_lea.vmem [#allocation4], %s196
        %p198 = pneg %p39
        %p199 = pneg %p36
        %p200 = pneg %p60
        %p201 = pneg %p57
        %p202 = pneg %p81
        %p203 = pneg %p78
        %p204 = pneg %p102
        %p205 = pneg %p99
        %p206 = pneg %p128
        %p207 = pneg %p125
        %p208 = scmp.lt.s32.totalorder %s18, 1
        %s209 = scalar_select %p208, %s18, 1
        %s210 = smul.addr %s209, 8
        %s211 = smul.addr %s210, 8
        %s212 = scalar_lea.vmem %s4, %s211
        %p213 = scmp.lt.s32.totalorder %s18, 1
        %s214 = scalar_select %p213, %s18, 1
        %s215 = smul.addr %s214, 8
        %s216 = smul.addr %s215, 8
        %s217 = scalar_lea.vmem %s4, %s216
        %v219 = vld [vmem:[%s188] sm:$0xf]
        %v220 = vld [vmem:[%s188 + $0x4] sm:$0xf]
        %v221 = vld [vmem:[%s188 + $0x8] sm:$0xf]
        %v222 = vld [vmem:[%s188 + $0xc] sm:$0xf]
        %v223 = vld [vmem:[%s188 + $0x10] sm:$0xf]
        %v224 = vld [vmem:[%s188 + $0x14] sm:$0xf]
        %v225 = vld [vmem:[%s188 + $0x18] sm:$0xf]
        %v226 = vld [vmem:[%s188 + $0x1c] sm:$0xf]
        %v227 = vld [vmem:[%s188 + $0x20] sm:$0xf]
        %v228 = vld [vmem:[%s188 + $0x24] sm:$0xf]
        %v229 = vld [vmem:[%s188 + $0x28] sm:$0xf]
        %v230 = vld [vmem:[%s188 + $0x2c] sm:$0xf]
        %v231 = vld [vmem:[%s188 + $0x30] sm:$0xf]
        %v232 = vld [vmem:[%s188 + $0x34] sm:$0xf]
        %v233 = vld [vmem:[%s188 + $0x38] sm:$0xf]
        %v234 = vld [vmem:[%s188 + $0x3c] sm:$0xf]
        %v235 = vmax.bf16 %v219, %v220
        %v236 = vmax.bf16 %v221, %v222
        %v237 = vmax.bf16 %v223, %v224
        %v238 = vmax.bf16 %v225, %v226
        %v239 = vmax.bf16 %v227, %v228
        %v240 = vmax.bf16 %v229, %v230
        %v241 = vmax.bf16 %v231, %v232
        %v242 = vmax.bf16 %v233, %v234
        %251 = vrot.lane.b32.xlu0 %v235, 124
        %v252 = vpop.permute.xlu0 %251
        %253 = vrot.lane.b32.xlu0 %v236, 124
        %v254 = vpop.permute.xlu0 %253
        %255 = vrot.lane.b32.xlu0 %v237, 124
        %v256 = vpop.permute.xlu0 %255
        %257 = vrot.lane.b32.xlu0 %v238, 124
        %v258 = vpop.permute.xlu0 %257
        %259 = vrot.lane.b32.xlu0 %v239, 124
        %v260 = vpop.permute.xlu0 %259
        %261 = vrot.lane.b32.xlu0 %v240, 124
        %v262 = vpop.permute.xlu0 %261
        %263 = vrot.lane.b32.xlu0 %v241, 124
        %v264 = vpop.permute.xlu0 %263
        %265 = vrot.lane.b32.xlu0 %v242, 124
        %v266 = vpop.permute.xlu0 %265
        %v275 = vmax.bf16 %v235, %v252
        %v276 = vmax.bf16 %v236, %v254
        %v277 = vmax.bf16 %v237, %v256
        %v278 = vmax.bf16 %v238, %v258
        %v279 = vmax.bf16 %v239, %v260
        %v280 = vmax.bf16 %v240, %v262
        %v281 = vmax.bf16 %v241, %v264
        %v282 = vmax.bf16 %v242, %v266
        %vm283 = vcmask 31744
        %284 = vst.msk [vmem:[#allocation2] sm:$0xff] %vm283, 0.0
        %vm285 = vcmask 25600
        %286 = vst.msk [vmem:[#allocation2 + $0x8] sm:$0x3] %vm285, 0.0
        %287 = vst.msk [vmem:[#allocation2 + $0x10] sm:$0xff] %vm283, 0.0
        %288 = vst.msk [vmem:[#allocation2 + $0x18] sm:$0x3] %vm285, 0.0
        %289 = vst.msk [vmem:[#allocation2 + $0x20] sm:$0xff] %vm283, 0.0
        %290 = vst.msk [vmem:[#allocation2 + $0x28] sm:$0x3] %vm285, 0.0
        %291 = vst.msk [vmem:[#allocation2 + $0x30] sm:$0xff] %vm283, 0.0
        %292 = vst.msk [vmem:[#allocation2 + $0x38] sm:$0x3] %vm285, 0.0
        %293 = vst.msk [vmem:[#allocation2 + $0x40] sm:$0xff] %vm283, 0.0
        %294 = vst.msk [vmem:[#allocation2 + $0x48] sm:$0x3] %vm285, 0.0
        %295 = vst.msk [vmem:[#allocation2 + $0x50] sm:$0xff] %vm283, 0.0
        %296 = vst.msk [vmem:[#allocation2 + $0x58] sm:$0x3] %vm285, 0.0
        %297 = vst.msk [vmem:[#allocation2 + $0x60] sm:$0xff] %vm283, 0.0
        %298 = vst.msk [vmem:[#allocation2 + $0x68] sm:$0x3] %vm285, 0.0
        %299 = vst.msk [vmem:[#allocation2 + $0x70] sm:$0xff] %vm283, 0.0
        %300 = vst.msk [vmem:[#allocation2 + $0x78] sm:$0x3] %vm285, 0.0
        %301 = vst.msk [vmem:[#allocation2 + $0x80] sm:$0xff] %vm283, 0.0
        %302 = vst.msk [vmem:[#allocation2 + $0x88] sm:$0x3] %vm285, 0.0
        %303 = vst.msk [vmem:[#allocation2 + $0x90] sm:$0xff] %vm283, 0.0
        %304 = vst.msk [vmem:[#allocation2 + $0x98] sm:$0x3] %vm285, 0.0
        %vm305 = vcmask 64512
        %306 = vst.msk [vmem:[#allocation3] sm:$0xff] %vm305, 0.0
        %vm307 = vcmask 58368
        %308 = vst.msk [vmem:[#allocation3 + $0x8] sm:$0x3] %vm307, 0.0
        %309 = vst.msk [vmem:[#allocation3 + $0x10] sm:$0xff] %vm305, 0.0
        %310 = vst.msk [vmem:[#allocation3 + $0x18] sm:$0x3] %vm307, 0.0
        %311 = vst.msk [vmem:[#allocation3 + $0x20] sm:$0xff] %vm305, 0.0
        %312 = vst.msk [vmem:[#allocation3 + $0x28] sm:$0x3] %vm307, 0.0
        %313 = vst.msk [vmem:[#allocation3 + $0x30] sm:$0xff] %vm305, 0.0
        %314 = vst.msk [vmem:[#allocation3 + $0x38] sm:$0x3] %vm307, 0.0
        %315 = vst.msk [vmem:[#allocation3 + $0x40] sm:$0xff] %vm305, 0.0
        %316 = vst.msk [vmem:[#allocation3 + $0x48] sm:$0x3] %vm307, 0.0
        %317 = vst.msk [vmem:[#allocation3 + $0x50] sm:$0xff] %vm305, 0.0
        %318 = vst.msk [vmem:[#allocation3 + $0x58] sm:$0x3] %vm307, 0.0
        %319 = vst.msk [vmem:[#allocation3 + $0x60] sm:$0xff] %vm305, 0.0
        %320 = vst.msk [vmem:[#allocation3 + $0x68] sm:$0x3] %vm307, 0.0
        %321 = vst.msk [vmem:[#allocation3 + $0x70] sm:$0xff] %vm305, 0.0
        %322 = vst.msk [vmem:[#allocation3 + $0x78] sm:$0x3] %vm307, 0.0
        %323 = vst.msk [vmem:[#allocation3 + $0x80] sm:$0xff] %vm305, 0.0
        %324 = vst.msk [vmem:[#allocation3 + $0x88] sm:$0x3] %vm307, 0.0
        %325 = vst.msk [vmem:[#allocation3 + $0x90] sm:$0xff] %vm305, 0.0
        %326 = vst.msk [vmem:[#allocation3 + $0x98] sm:$0x3] %vm307, 0.0
        %v327 = vunpack.c.l.bf16 %v275
        %v328 = vunpack.c.l.bf16 %v276
        %v329 = vunpack.c.l.bf16 %v277
        %v330 = vunpack.c.l.bf16 %v278
        %v331 = vunpack.c.l.bf16 %v279
        %v332 = vunpack.c.l.bf16 %v280
        %v333 = vunpack.c.l.bf16 %v281
        %v334 = vunpack.c.l.bf16 %v282
        %s335 = scalar_lea.vmem [#allocation2], 16
        %336 = vst.msk [vmem:[%s335 + $0x1] sm:$0xff] %vm283, %v327
        %337 = vst.msk [vmem:[%s335 + $0x11] sm:$0xff] %vm283, %v328
        %338 = vst.msk [vmem:[%s335 + $0x21] sm:$0xff] %vm283, %v329
        %339 = vst.msk [vmem:[%s335 + $0x31] sm:$0xff] %vm283, %v330
        %340 = vst.msk [vmem:[%s335 + $0x41] sm:$0xff] %vm283, %v331
        %341 = vst.msk [vmem:[%s335 + $0x51] sm:$0xff] %vm283, %v332
        %342 = vst.msk [vmem:[%s335 + $0x61] sm:$0xff] %vm283, %v333
        %343 = vst.msk [vmem:[%s335 + $0x71] sm:$0xff] %vm283, %v334
        %v344 = vld [vmem:[#allocation2] sm:$0xff]
        %v345 = vld [vmem:[#allocation2 + $0x10] sm:$0xff]
        %v346 = vld [vmem:[#allocation2 + $0x20] sm:$0xff]
        %v347 = vld [vmem:[#allocation2 + $0x30] sm:$0xff]
        %v348 = vld [vmem:[#allocation2 + $0x40] sm:$0xff]
        %v349 = vld [vmem:[#allocation2 + $0x50] sm:$0xff]
        %v350 = vld [vmem:[#allocation2 + $0x60] sm:$0xff]
        %v351 = vld [vmem:[#allocation2 + $0x70] sm:$0xff]
        %v352 = vld [vmem:[#allocation2 + $0x1] sm:$0xff]
        %v353 = vld [vmem:[#allocation2 + $0x11] sm:$0xff]
        %v354 = vld [vmem:[#allocation2 + $0x21] sm:$0xff]
        %v355 = vld [vmem:[#allocation2 + $0x31] sm:$0xff]
        %v356 = vld [vmem:[#allocation2 + $0x41] sm:$0xff]
        %v357 = vld [vmem:[#allocation2 + $0x51] sm:$0xff]
        %v358 = vld [vmem:[#allocation2 + $0x61] sm:$0xff]
        %v359 = vld [vmem:[#allocation2 + $0x71] sm:$0xff]
        %v360 = vld [vmem:[#allocation2 + $0x2] sm:$0xff]
        %v361 = vld [vmem:[#allocation2 + $0x12] sm:$0xff]
        %v362 = vld [vmem:[#allocation2 + $0x22] sm:$0xff]
        %v363 = vld [vmem:[#allocation2 + $0x32] sm:$0xff]
        %v364 = vld [vmem:[#allocation2 + $0x42] sm:$0xff]
        %v365 = vld [vmem:[#allocation2 + $0x52] sm:$0xff]
        %v366 = vld [vmem:[#allocation2 + $0x62] sm:$0xff]
        %v367 = vld [vmem:[#allocation2 + $0x72] sm:$0xff]
        %v368 = vld [vmem:[%s335] sm:$0xff]
        %v369 = vld [vmem:[%s335 + $0x10] sm:$0xff]
        %v370 = vld [vmem:[%s335 + $0x20] sm:$0xff]
        %v371 = vld [vmem:[%s335 + $0x30] sm:$0xff]
        %v372 = vld [vmem:[%s335 + $0x40] sm:$0xff]
        %v373 = vld [vmem:[%s335 + $0x50] sm:$0xff]
        %v374 = vld [vmem:[%s335 + $0x60] sm:$0xff]
        %v375 = vld [vmem:[%s335 + $0x70] sm:$0xff]
        %v376 = vld [vmem:[%s335 + $0x1] sm:$0xff]
        %v377 = vld [vmem:[%s335 + $0x11] sm:$0xff]
        %v378 = vld [vmem:[%s335 + $0x21] sm:$0xff]
        %v379 = vld [vmem:[%s335 + $0x31] sm:$0xff]
        %v380 = vld [vmem:[%s335 + $0x41] sm:$0xff]
        %v381 = vld [vmem:[%s335 + $0x51] sm:$0xff]
        %v382 = vld [vmem:[%s335 + $0x61] sm:$0xff]
        %v383 = vld [vmem:[%s335 + $0x71] sm:$0xff]
        %v384 = vld [vmem:[%s335 + $0x2] sm:$0xff]
        %v385 = vld [vmem:[%s335 + $0x12] sm:$0xff]
        %v386 = vld [vmem:[%s335 + $0x22] sm:$0xff]
        %v387 = vld [vmem:[%s335 + $0x32] sm:$0xff]
        %v388 = vld [vmem:[%s335 + $0x42] sm:$0xff]
        %v389 = vld [vmem:[%s335 + $0x52] sm:$0xff]
        %v390 = vld [vmem:[%s335 + $0x62] sm:$0xff]
        %v391 = vld [vmem:[%s335 + $0x72] sm:$0xff]
        %s392 = scalar_lea.vmem [#allocation2], 32
        %v393 = vld [vmem:[%s392] sm:$0xff]
        %v394 = vld [vmem:[%s392 + $0x10] sm:$0xff]
        %v395 = vld [vmem:[%s392 + $0x20] sm:$0xff]
        %v396 = vld [vmem:[%s392 + $0x30] sm:$0xff]
        %v397 = vld [vmem:[%s392 + $0x40] sm:$0xff]
        %v398 = vld [vmem:[%s392 + $0x50] sm:$0xff]
        %v399 = vld [vmem:[%s392 + $0x60] sm:$0xff]
        %v400 = vld [vmem:[%s392 + $0x70] sm:$0xff]
        %v401 = vld [vmem:[%s392 + $0x1] sm:$0xff]
        %v402 = vld [vmem:[%s392 + $0x11] sm:$0xff]
        %v403 = vld [vmem:[%s392 + $0x21] sm:$0xff]
        %v404 = vld [vmem:[%s392 + $0x31] sm:$0xff]
        %v405 = vld [vmem:[%s392 + $0x41] sm:$0xff]
        %v406 = vld [vmem:[%s392 + $0x51] sm:$0xff]
        %v407 = vld [vmem:[%s392 + $0x61] sm:$0xff]
        %v408 = vld [vmem:[%s392 + $0x71] sm:$0xff]
        %v409 = vld [vmem:[%s392 + $0x2] sm:$0xff]
        %v410 = vld [vmem:[%s392 + $0x12] sm:$0xff]
        %v411 = vld [vmem:[%s392 + $0x22] sm:$0xff]
        %v412 = vld [vmem:[%s392 + $0x32] sm:$0xff]
        %v413 = vld [vmem:[%s392 + $0x42] sm:$0xff]
        %v414 = vld [vmem:[%s392 + $0x52] sm:$0xff]
        %v415 = vld [vmem:[%s392 + $0x62] sm:$0xff]
        %v416 = vld [vmem:[%s392 + $0x72] sm:$0xff]
        %425 = vrot.lane.b32.xlu0 %v352, 4
        %v426 = vpop.permute.xlu0 %425
        %427 = vrot.lane.b32.xlu0 %v353, 4
        %v428 = vpop.permute.xlu0 %427
        %429 = vrot.lane.b32.xlu0 %v354, 4
        %v430 = vpop.permute.xlu0 %429
        %431 = vrot.lane.b32.xlu0 %v355, 4
        %v432 = vpop.permute.xlu0 %431
        %433 = vrot.lane.b32.xlu0 %v356, 4
        %v434 = vpop.permute.xlu0 %433
        %435 = vrot.lane.b32.xlu0 %v357, 4
        %v436 = vpop.permute.xlu0 %435
        %437 = vrot.lane.b32.xlu0 %v358, 4
        %v438 = vpop.permute.xlu0 %437
        %439 = vrot.lane.b32.xlu0 %v359, 4
        %v440 = vpop.permute.xlu0 %439
        %457 = vrot.lane.b32.xlu0 %v360, 8
        %v458 = vpop.permute.xlu0 %457
        %459 = vrot.lane.b32.xlu0 %v361, 8
        %v460 = vpop.permute.xlu0 %459
        %461 = vrot.lane.b32.xlu0 %v362, 8
        %v462 = vpop.permute.xlu0 %461
        %463 = vrot.lane.b32.xlu0 %v363, 8
        %v464 = vpop.permute.xlu0 %463
        %465 = vrot.lane.b32.xlu0 %v364, 8
        %v466 = vpop.permute.xlu0 %465
        %467 = vrot.lane.b32.xlu0 %v365, 8
        %v468 = vpop.permute.xlu0 %467
        %469 = vrot.lane.b32.xlu0 %v366, 8
        %v470 = vpop.permute.xlu0 %469
        %471 = vrot.lane.b32.xlu0 %v367, 8
        %v472 = vpop.permute.xlu0 %471
        %489 = vrot.lane.b32.xlu0 %v368, 12
        %v490 = vpop.permute.xlu0 %489
        %491 = vrot.lane.b32.xlu0 %v369, 12
        %v492 = vpop.permute.xlu0 %491
        %493 = vrot.lane.b32.xlu0 %v370, 12
        %v494 = vpop.permute.xlu0 %493
        %495 = vrot.lane.b32.xlu0 %v371, 12
        %v496 = vpop.permute.xlu0 %495
        %497 = vrot.lane.b32.xlu0 %v372, 12
        %v498 = vpop.permute.xlu0 %497
        %499 = vrot.lane.b32.xlu0 %v373, 12
        %v500 = vpop.permute.xlu0 %499
        %501 = vrot.lane.b32.xlu0 %v374, 12
        %v502 = vpop.permute.xlu0 %501
        %503 = vrot.lane.b32.xlu0 %v375, 12
        %v504 = vpop.permute.xlu0 %503
        %521 = vrot.lane.b32.xlu0 %v376, 16
        %v522 = vpop.permute.xlu0 %521
        %523 = vrot.lane.b32.xlu0 %v377, 16
        %v524 = vpop.permute.xlu0 %523
        %525 = vrot.lane.b32.xlu0 %v378, 16
        %v526 = vpop.permute.xlu0 %525
        %527 = vrot.lane.b32.xlu0 %v379, 16
        %v528 = vpop.permute.xlu0 %527
        %529 = vrot.lane.b32.xlu0 %v380, 16
        %v530 = vpop.permute.xlu0 %529
        %531 = vrot.lane.b32.xlu0 %v381, 16
        %v532 = vpop.permute.xlu0 %531
        %533 = vrot.lane.b32.xlu0 %v382, 16
        %v534 = vpop.permute.xlu0 %533
        %535 = vrot.lane.b32.xlu0 %v383, 16
        %v536 = vpop.permute.xlu0 %535
        %553 = vrot.lane.b32.xlu0 %v384, 20
        %v554 = vpop.permute.xlu0 %553
        %555 = vrot.lane.b32.xlu0 %v385, 20
        %v556 = vpop.permute.xlu0 %555
        %557 = vrot.lane.b32.xlu0 %v386, 20
        %v558 = vpop.permute.xlu0 %557
        %559 = vrot.lane.b32.xlu0 %v387, 20
        %v560 = vpop.permute.xlu0 %559
        %561 = vrot.lane.b32.xlu0 %v388, 20
        %v562 = vpop.permute.xlu0 %561
        %563 = vrot.lane.b32.xlu0 %v389, 20
        %v564 = vpop.permute.xlu0 %563
        %565 = vrot.lane.b32.xlu0 %v390, 20
        %v566 = vpop.permute.xlu0 %565
        %567 = vrot.lane.b32.xlu0 %v391, 20
        %v568 = vpop.permute.xlu0 %567
        %585 = vrot.lane.b32.xlu0 %v393, 24
        %v586 = vpop.permute.xlu0 %585
        %587 = vrot.lane.b32.xlu0 %v394, 24
        %v588 = vpop.permute.xlu0 %587
        %589 = vrot.lane.b32.xlu0 %v395, 24
        %v590 = vpop.permute.xlu0 %589
        %591 = vrot.lane.b32.xlu0 %v396, 24
        %v592 = vpop.permute.xlu0 %591
        %593 = vrot.lane.b32.xlu0 %v397, 24
        %v594 = vpop.permute.xlu0 %593
        %595 = vrot.lane.b32.xlu0 %v398, 24
        %v596 = vpop.permute.xlu0 %595
        %597 = vrot.lane.b32.xlu0 %v399, 24
        %v598 = vpop.permute.xlu0 %597
        %599 = vrot.lane.b32.xlu0 %v400, 24
        %v600 = vpop.permute.xlu0 %599
        %617 = vrot.lane.b32.xlu0 %v401, 28
        %v618 = vpop.permute.xlu0 %617
        %619 = vrot.lane.b32.xlu0 %v402, 28
        %v620 = vpop.permute.xlu0 %619
        %621 = vrot.lane.b32.xlu0 %v403, 28
        %v622 = vpop.permute.xlu0 %621
        %623 = vrot.lane.b32.xlu0 %v404, 28
        %v624 = vpop.permute.xlu0 %623
        %625 = vrot.lane.b32.xlu0 %v405, 28
        %v626 = vpop.permute.xlu0 %625
        %627 = vrot.lane.b32.xlu0 %v406, 28
        %v628 = vpop.permute.xlu0 %627
        %629 = vrot.lane.b32.xlu0 %v407, 28
        %v630 = vpop.permute.xlu0 %629
        %631 = vrot.lane.b32.xlu0 %v408, 28
        %v632 = vpop.permute.xlu0 %631
        %649 = vrot.lane.b32.xlu0 %v409, 32
        %v650 = vpop.permute.xlu0 %649
        %651 = vrot.lane.b32.xlu0 %v410, 32
        %v652 = vpop.permute.xlu0 %651
        %653 = vrot.lane.b32.xlu0 %v411, 32
        %v654 = vpop.permute.xlu0 %653
        %655 = vrot.lane.b32.xlu0 %v412, 32
        %v656 = vpop.permute.xlu0 %655
        %657 = vrot.lane.b32.xlu0 %v413, 32
        %v658 = vpop.permute.xlu0 %657
        %659 = vrot.lane.b32.xlu0 %v414, 32
        %v660 = vpop.permute.xlu0 %659
        %661 = vrot.lane.b32.xlu0 %v415, 32
        %v662 = vpop.permute.xlu0 %661
        %663 = vrot.lane.b32.xlu0 %v416, 32
        %v664 = vpop.permute.xlu0 %663
        %v673 = vsel %vm283, %v344, %v426
        %v674 = vsel %vm283, %v345, %v428
        %v675 = vsel %vm283, %v346, %v430
        %v676 = vsel %vm283, %v347, %v432
        %v677 = vsel %vm283, %v348, %v434
        %v678 = vsel %vm283, %v349, %v436
        %v679 = vsel %vm283, %v350, %v438
        %v680 = vsel %vm283, %v351, %v440
        %v681 = vsel %vm305, %v673, %v458
        %v682 = vsel %vm305, %v674, %v460
        %v683 = vsel %vm305, %v675, %v462
        %v684 = vsel %vm305, %v676, %v464
        %v685 = vsel %vm305, %v677, %v466
        %v686 = vsel %vm305, %v678, %v468
        %v687 = vsel %vm305, %v679, %v470
        %v688 = vsel %vm305, %v680, %v472
        %vm689 = vcmask 97280
        %v690 = vsel %vm689, %v681, %v490
        %v691 = vsel %vm689, %v682, %v492
        %v692 = vsel %vm689, %v683, %v494
        %v693 = vsel %vm689, %v684, %v496
        %v694 = vsel %vm689, %v685, %v498
        %v695 = vsel %vm689, %v686, %v500
        %v696 = vsel %vm689, %v687, %v502
        %v697 = vsel %vm689, %v688, %v504
        %vm698 = vcmask 130048
        %v699 = vsel %vm698, %v690, %v522
        %v700 = vsel %vm698, %v691, %v524
        %v701 = vsel %vm698, %v692, %v526
        %v702 = vsel %vm698, %v693, %v528
        %v703 = vsel %vm698, %v694, %v530
        %v704 = vsel %vm698, %v695, %v532
        %v705 = vsel %vm698, %v696, %v534
        %v706 = vsel %vm698, %v697, %v536
        %vm707 = vcmask 162816
        %v708 = vsel %vm707, %v699, %v554
        %v709 = vsel %vm707, %v700, %v556
        %v710 = vsel %vm707, %v701, %v558
        %v711 = vsel %vm707, %v702, %v560
        %v712 = vsel %vm707, %v703, %v562
        %v713 = vsel %vm707, %v704, %v564
        %v714 = vsel %vm707, %v705, %v566
        %v715 = vsel %vm707, %v706, %v568
        %vm716 = vcmask 195584
        %v717 = vsel %vm716, %v708, %v586
        %v718 = vsel %vm716, %v709, %v588
        %v719 = vsel %vm716, %v710, %v590
        %v720 = vsel %vm716, %v711, %v592
        %v721 = vsel %vm716, %v712, %v594
        %v722 = vsel %vm716, %v713, %v596
        %v723 = vsel %vm716, %v714, %v598
        %v724 = vsel %vm716, %v715, %v600
        %vm725 = vcmask 228352
        %v726 = vsel %vm725, %v717, %v618
        %v727 = vsel %vm725, %v718, %v620
        %v728 = vsel %vm725, %v719, %v622
        %v729 = vsel %vm725, %v720, %v624
        %v730 = vsel %vm725, %v721, %v626
        %v731 = vsel %vm725, %v722, %v628
        %v732 = vsel %vm725, %v723, %v630
        %v733 = vsel %vm725, %v724, %v632
        %vm734 = vcmask 261120
        %v735 = vsel %vm734, %v726, %v650
        %v736 = vsel %vm734, %v727, %v652
        %v737 = vsel %vm734, %v728, %v654
        %v738 = vsel %vm734, %v729, %v656
        %v739 = vsel %vm734, %v730, %v658
        %v740 = vsel %vm734, %v731, %v660
        %v741 = vsel %vm734, %v732, %v662
        %v742 = vsel %vm734, %v733, %v664
        %v743 = vpack.c.bf16 %v736, %v735
        %v744 = vpack.c.bf16 %v738, %v737
        %v745 = vpack.c.bf16 %v740, %v739
        %v746 = vpack.c.bf16 %v742, %v741
        %v747 = vld [vmem:[%s1] sm:$0xf]
        %v748 = vld [vmem:[%s1 + $0x4] sm:$0xf]
        %v749 = vld [vmem:[%s1 + $0x8] sm:$0xf]
        %v750 = vld [vmem:[%s1 + $0xc] sm:$0xf]
        %v751 = vld [vmem:[%s1 + $0x10] sm:$0x3]
        %v757 = vunpack.c.l.b16 %v747
        %v758 = vunpack.c.l.b16 %v748
        %v759 = vunpack.c.l.b16 %v749
        %v760 = vunpack.c.l.b16 %v750
        %v761 = vunpack.c.l.b16 %v751
        %v762 = vpack.c.b16 %v758, %v757
        %v763 = vpack.c.b16 %v760, %v759
        %v764 = vpack.c.b16 %v761, %v761
        %vm767 = vcmask 293888
        %v769 = vsel %vm767, %v743, 0
        %v772 = vsel %vm767, %v744, 0
        %v775 = vsel %vm767, %v745, 0
        %v778 = vsel %vm767, %v746, 0
        %vm780 = vcmask 1041408
        %v782 = vsel %vm780, %v764, 0
        %784 = vmatprep.subr.bf16.mxu0 0
        %785 = vmatpush1.bf16.msra.mxu0 %v762
        %786 = vmatprep.subr.bf16.mxu0 0
        %787 = vmatpush1.bf16.msra.mxu0 %v763
        %788 = vmatprep.subr.bf16.mxu0 0
        %789 = vmatpush1.bf16.msra.mxu0 %v782
        %790 = vmatprep.subr.bf16.mxu0 0
        %791 = vmatpush1.bf16.msra.mxu0 0
        %792 = vmatprep.subr.bf16.mxu0 0
        %793 = vmatpush1.bf16.msra.mxu0 0
        %794 = vmatprep.subr.bf16.mxu0 0
        %795 = vmatpush1.bf16.msra.mxu0 0
        %796 = vmatprep.subr.bf16.mxu0 0
        %797 = vmatpush1.bf16.msra.mxu0 0
        %798 = vmatprep.subr.bf16.mxu0 0
        %799 = vmatpush1.bf16.msra.mxu0 0
        %800 = vmatprep.subr.bf16.mxu0 0
        %801 = vmatpush1.bf16.msra.mxu0 0
        %802 = vmatprep.subr.bf16.mxu0 0
        %803 = vmatpush1.bf16.msra.mxu0 0
        %804 = vmatprep.subr.bf16.mxu0 0
        %805 = vmatpush1.bf16.msra.mxu0 0
        %806 = vmatprep.subr.bf16.mxu0 0
        %807 = vmatpush1.bf16.msra.mxu0 0
        %808 = vmatprep.subr.bf16.mxu0 0
        %809 = vmatpush1.bf16.msra.mxu0 0
        %810 = vmatprep.subr.bf16.mxu0 0
        %811 = vmatpush1.bf16.msra.mxu0 0
        %812 = vmatprep.subr.bf16.mxu0 0
        %813 = vmatpush1.bf16.msra.mxu0 0
        %814 = vmatprep.subr.bf16.mxu0 0
        %815 = vmatpush1.bf16.msra.mxu0 0
        %816 = vmatprep.mubr.bf16.mxu0 0
        %817 = vmatmul.mubr.bf16.gmra.mrb[0].mxu0 %v769
        %v818 = vpop.f32.mrb[0].mxu0
        %v819 = vadd.f32 0.0, %v818
        %v820 = vpop.f32.mrb[0].mxu0
        %v821 = vpop.f32.mrb[0].mxu0
        %v822 = vadd.f32 0.0, %v821
        %v823 = vpop.f32.mrb[0].mxu0
        %824 = vmatprep.mubr.bf16.mxu0 0
        %825 = vmatmul.mubr.bf16.gmra.mrb[0].mxu0 %v772
        %v826 = vpop.f32.mrb[0].mxu0
        %v827 = vadd.f32 0.0, %v826
        %v828 = vpop.f32.mrb[0].mxu0
        %v829 = vpop.f32.mrb[0].mxu0
        %v830 = vadd.f32 0.0, %v829
        %v831 = vpop.f32.mrb[0].mxu0
        %832 = vmatprep.mubr.bf16.mxu0 0
        %833 = vmatmul.mubr.bf16.gmra.mrb[0].mxu0 %v775
        %v834 = vpop.f32.mrb[0].mxu0
        %v835 = vadd.f32 0.0, %v834
        %v836 = vpop.f32.mrb[0].mxu0
        %v837 = vpop.f32.mrb[0].mxu0
        %v838 = vadd.f32 0.0, %v837
        %v839 = vpop.f32.mrb[0].mxu0
        %840 = vmatprep.mubr.bf16.mxu0 0
        %841 = vmatmul.mubr.bf16.gmra.mrb[0].mxu0 %v778
        %v842 = vpop.f32.mrb[0].mxu0
        %v843 = vadd.f32 0.0, %v842
        %v844 = vpop.f32.mrb[0].mxu0
        %v845 = vpop.f32.mrb[0].mxu0
        %v846 = vadd.f32 0.0, %v845
        %v847 = vpop.f32.mrb[0].mxu0
        %848 = vdwg.mxu0
        %v849 = vsel %vm305, %v819, 0.0
        %v850 = vsel %vm305, %v822, 0.0
        %v851 = vadd.f32 %v849, %v850
        %v852 = vsel %vm305, %v827, 0.0
        %v853 = vadd.f32 %v851, %v852
        %v854 = vsel %vm305, %v830, 0.0
        %v855 = vadd.f32 %v853, %v854
        %v856 = vsel %vm305, %v835, 0.0
        %v857 = vadd.f32 %v855, %v856
        %v858 = vsel %vm305, %v838, 0.0
        %v859 = vadd.f32 %v857, %v858
        %v860 = vsel %vm305, %v843, 0.0
        %v861 = vadd.f32 %v859, %v860
        %v862 = vsel %vm305, %v846, 0.0
        %v863 = vadd.f32 %v861, %v862
        %v864 = vrot.slane %v863, 4
        %v865 = vadd.f32 %v863, %v864
        %v866 = vrot.slane %v865, 2
        %v867 = vadd.f32 %v865, %v866
        %v868 = vrot.slane %v867, 1
        %v869 = vadd.f32 %v867, %v868
        %v870 = vmul.f32 %v869, 0.015625
        %v871 = vmul.f32 %v819, %v819
        %v872 = vmul.f32 %v822, %v822
        %v873 = vmul.f32 %v827, %v827
        %v874 = vmul.f32 %v830, %v830
        %v875 = vmul.f32 %v835, %v835
        %v876 = vmul.f32 %v838, %v838
        %v877 = vmul.f32 %v843, %v843
        %v878 = vmul.f32 %v846, %v846
        %v879 = vsel %vm305, %v871, 0.0
        %v880 = vsel %vm305, %v872, 0.0
        %v881 = vadd.f32 %v879, %v880
        %v882 = vsel %vm305, %v873, 0.0
        %v883 = vadd.f32 %v881, %v882
        %v884 = vsel %vm305, %v874, 0.0
        %v885 = vadd.f32 %v883, %v884
        %v886 = vsel %vm305, %v875, 0.0
        %v887 = vadd.f32 %v885, %v886
        %v888 = vsel %vm305, %v876, 0.0
        %v889 = vadd.f32 %v887, %v888
        %v890 = vsel %vm305, %v877, 0.0
        %v891 = vadd.f32 %v889, %v890
        %v892 = vsel %vm305, %v878, 0.0
        %v893 = vadd.f32 %v891, %v892
        %v894 = vrot.slane %v893, 4
        %v895 = vadd.f32 %v893, %v894
        %v896 = vrot.slane %v895, 2
        %v897 = vadd.f32 %v895, %v896
        %v898 = vrot.slane %v897, 1
        %v899 = vadd.f32 %v897, %v898
        %v900 = vmul.f32 %v899, 0.015625
        %v901 = vmul.f32 %v870, %v870
        %v902 = vsub.f32 %v900, %v901
        %v903 = vmax.f32 %v902, 0.0
        %v904 = vsub.f32 %v819, %v870
        %v905 = vsub.f32 %v822, %v870
        %v906 = vsub.f32 %v827, %v870
        %v907 = vsub.f32 %v830, %v870
        %v908 = vsub.f32 %v835, %v870
        %v909 = vsub.f32 %v838, %v870
        %v910 = vsub.f32 %v843, %v870
        %v911 = vsub.f32 %v846, %v870
        %v912 = vadd.f32 %v903, 1e-05
        %v913 = vrsqrt.pop %v912
        %v914 = vmul.f32 %v904, %v913
        %v915 = vmul.f32 %v905, %v913
        %v916 = vmul.f32 %v906, %v913
        %v917 = vmul.f32 %v907, %v913
        %v918 = vmul.f32 %v908, %v913
        %v919 = vmul.f32 %v909, %v913
        %v920 = vmul.f32 %v910, %v913
        %v921 = vmul.f32 %v911, %v913
        %s922 = scalar_lea.vmem [#allocation3], 16
        %923 = vst.msk [vmem:[%s922 + $0x1] sm:$0xff] %vm305, %v914
        %924 = vst.msk [vmem:[%s922 + $0x11] sm:$0xff] %vm305, %v915
        %925 = vst.msk [vmem:[%s922 + $0x21] sm:$0xff] %vm305, %v916
        %926 = vst.msk [vmem:[%s922 + $0x31] sm:$0xff] %vm305, %v917
        %927 = vst.msk [vmem:[%s922 + $0x41] sm:$0xff] %vm305, %v918
        %928 = vst.msk [vmem:[%s922 + $0x51] sm:$0xff] %vm305, %v919
        %929 = vst.msk [vmem:[%s922 + $0x61] sm:$0xff] %vm305, %v920
        %930 = vst.msk [vmem:[%s922 + $0x71] sm:$0xff] %vm305, %v921
        %v931 = vld [vmem:[#allocation3] sm:$0xff]
        %v932 = vld [vmem:[#allocation3 + $0x10] sm:$0xff]
        %v933 = vld [vmem:[#allocation3 + $0x20] sm:$0xff]
        %v934 = vld [vmem:[#allocation3 + $0x30] sm:$0xff]
        %v935 = vld [vmem:[#allocation3 + $0x40] sm:$0xff]
        %v936 = vld [vmem:[#allocation3 + $0x50] sm:$0xff]
        %v937 = vld [vmem:[#allocation3 + $0x60] sm:$0xff]
        %v938 = vld [vmem:[#allocation3 + $0x70] sm:$0xff]
        %v939 = vld [vmem:[#allocation3 + $0x1] sm:$0xff]
        %v940 = vld [vmem:[#allocation3 + $0x11] sm:$0xff]
        %v941 = vld [vmem:[#allocation3 + $0x21] sm:$0xff]
        %v942 = vld [vmem:[#allocation3 + $0x31] sm:$0xff]
        %v943 = vld [vmem:[#allocation3 + $0x41] sm:$0xff]
        %v944 = vld [vmem:[#allocation3 + $0x51] sm:$0xff]
        %v945 = vld [vmem:[#allocation3 + $0x61] sm:$0xff]
        %v946 = vld [vmem:[#allocation3 + $0x71] sm:$0xff]
        %v947 = vld [vmem:[#allocation3 + $0x2] sm:$0xff]
        %v948 = vld [vmem:[#allocation3 + $0x12] sm:$0xff]
        %v949 = vld [vmem:[#allocation3 + $0x22] sm:$0xff]
        %v950 = vld [vmem:[#allocation3 + $0x32] sm:$0xff]
        %v951 = vld [vmem:[#allocation3 + $0x42] sm:$0xff]
        %v952 = vld [vmem:[#allocation3 + $0x52] sm:$0xff]
        %v953 = vld [vmem:[#allocation3 + $0x62] sm:$0xff]
        %v954 = vld [vmem:[#allocation3 + $0x72] sm:$0xff]
        %v955 = vld [vmem:[%s922] sm:$0xff]
        %v956 = vld [vmem:[%s922 + $0x10] sm:$0xff]
        %v957 = vld [vmem:[%s922 + $0x20] sm:$0xff]
        %v958 = vld [vmem:[%s922 + $0x30] sm:$0xff]
        %v959 = vld [vmem:[%s922 + $0x40] sm:$0xff]
        %v960 = vld [vmem:[%s922 + $0x50] sm:$0xff]
        %v961 = vld [vmem:[%s922 + $0x60] sm:$0xff]
        %v962 = vld [vmem:[%s922 + $0x70] sm:$0xff]
        %v963 = vld [vmem:[%s922 + $0x1] sm:$0xff]
        %v964 = vld [vmem:[%s922 + $0x11] sm:$0xff]
        %v965 = vld [vmem:[%s922 + $0x21] sm:$0xff]
        %v966 = vld [vmem:[%s922 + $0x31] sm:$0xff]
        %v967 = vld [vmem:[%s922 + $0x41] sm:$0xff]
        %v968 = vld [vmem:[%s922 + $0x51] sm:$0xff]
        %v969 = vld [vmem:[%s922 + $0x61] sm:$0xff]
        %v970 = vld [vmem:[%s922 + $0x71] sm:$0xff]
        %v971 = vld [vmem:[%s922 + $0x2] sm:$0xff]
        %v972 = vld [vmem:[%s922 + $0x12] sm:$0xff]
        %v973 = vld [vmem:[%s922 + $0x22] sm:$0xff]
        %v974 = vld [vmem:[%s922 + $0x32] sm:$0xff]
        %v975 = vld [vmem:[%s922 + $0x42] sm:$0xff]
        %v976 = vld [vmem:[%s922 + $0x52] sm:$0xff]
        %v977 = vld [vmem:[%s922 + $0x62] sm:$0xff]
        %v978 = vld [vmem:[%s922 + $0x72] sm:$0xff]
        %s979 = scalar_lea.vmem [#allocation3], 32
        %v980 = vld [vmem:[%s979] sm:$0xff]
        %v981 = vld [vmem:[%s979 + $0x10] sm:$0xff]
        %v982 = vld [vmem:[%s979 + $0x20] sm:$0xff]
        %v983 = vld [vmem:[%s979 + $0x30] sm:$0xff]
        %v984 = vld [vmem:[%s979 + $0x40] sm:$0xff]
        %v985 = vld [vmem:[%s979 + $0x50] sm:$0xff]
        %v986 = vld [vmem:[%s979 + $0x60] sm:$0xff]
        %v987 = vld [vmem:[%s979 + $0x70] sm:$0xff]
        %v988 = vld [vmem:[%s979 + $0x1] sm:$0xff]
        %v989 = vld [vmem:[%s979 + $0x11] sm:$0xff]
        %v990 = vld [vmem:[%s979 + $0x21] sm:$0xff]
        %v991 = vld [vmem:[%s979 + $0x31] sm:$0xff]
        %v992 = vld [vmem:[%s979 + $0x41] sm:$0xff]
        %v993 = vld [vmem:[%s979 + $0x51] sm:$0xff]
        %v994 = vld [vmem:[%s979 + $0x61] sm:$0xff]
        %v995 = vld [vmem:[%s979 + $0x71] sm:$0xff]
        %v996 = vld [vmem:[%s979 + $0x2] sm:$0xff]
        %v997 = vld [vmem:[%s979 + $0x12] sm:$0xff]
        %v998 = vld [vmem:[%s979 + $0x22] sm:$0xff]
        %v999 = vld [vmem:[%s979 + $0x32] sm:$0xff]
        %v1000 = vld [vmem:[%s979 + $0x42] sm:$0xff]
        %v1001 = vld [vmem:[%s979 + $0x52] sm:$0xff]
        %v1002 = vld [vmem:[%s979 + $0x62] sm:$0xff]
        %v1003 = vld [vmem:[%s979 + $0x72] sm:$0xff]
        %1012 = vrot.lane.b32.xlu0 %v939, 8
        %v1013 = vpop.permute.xlu0 %1012
        %1014 = vrot.lane.b32.xlu0 %v940, 8
        %v1015 = vpop.permute.xlu0 %1014
        %1016 = vrot.lane.b32.xlu0 %v941, 8
        %v1017 = vpop.permute.xlu0 %1016
        %1018 = vrot.lane.b32.xlu0 %v942, 8
        %v1019 = vpop.permute.xlu0 %1018
        %1020 = vrot.lane.b32.xlu0 %v943, 8
        %v1021 = vpop.permute.xlu0 %1020
        %1022 = vrot.lane.b32.xlu0 %v944, 8
        %v1023 = vpop.permute.xlu0 %1022
        %1024 = vrot.lane.b32.xlu0 %v945, 8
        %v1025 = vpop.permute.xlu0 %1024
        %1026 = vrot.lane.b32.xlu0 %v946, 8
        %v1027 = vpop.permute.xlu0 %1026
        %1044 = vrot.lane.b32.xlu0 %v947, 16
        %v1045 = vpop.permute.xlu0 %1044
        %1046 = vrot.lane.b32.xlu0 %v948, 16
        %v1047 = vpop.permute.xlu0 %1046
        %1048 = vrot.lane.b32.xlu0 %v949, 16
        %v1049 = vpop.permute.xlu0 %1048
        %1050 = vrot.lane.b32.xlu0 %v950, 16
        %v1051 = vpop.permute.xlu0 %1050
        %1052 = vrot.lane.b32.xlu0 %v951, 16
        %v1053 = vpop.permute.xlu0 %1052
        %1054 = vrot.lane.b32.xlu0 %v952, 16
        %v1055 = vpop.permute.xlu0 %1054
        %1056 = vrot.lane.b32.xlu0 %v953, 16
        %v1057 = vpop.permute.xlu0 %1056
        %1058 = vrot.lane.b32.xlu0 %v954, 16
        %v1059 = vpop.permute.xlu0 %1058
        %1076 = vrot.lane.b32.xlu0 %v955, 24
        %v1077 = vpop.permute.xlu0 %1076
        %1078 = vrot.lane.b32.xlu0 %v956, 24
        %v1079 = vpop.permute.xlu0 %1078
        %1080 = vrot.lane.b32.xlu0 %v957, 24
        %v1081 = vpop.permute.xlu0 %1080
        %1082 = vrot.lane.b32.xlu0 %v958, 24
        %v1083 = vpop.permute.xlu0 %1082
        %1084 = vrot.lane.b32.xlu0 %v959, 24
        %v1085 = vpop.permute.xlu0 %1084
        %1086 = vrot.lane.b32.xlu0 %v960, 24
        %v1087 = vpop.permute.xlu0 %1086
        %1088 = vrot.lane.b32.xlu0 %v961, 24
        %v1089 = vpop.permute.xlu0 %1088
        %1090 = vrot.lane.b32.xlu0 %v962, 24
        %v1091 = vpop.permute.xlu0 %1090
        %1108 = vrot.lane.b32.xlu0 %v963, 32
        %v1109 = vpop.permute.xlu0 %1108
        %1110 = vrot.lane.b32.xlu0 %v964, 32
        %v1111 = vpop.permute.xlu0 %1110
        %1112 = vrot.lane.b32.xlu0 %v965, 32
        %v1113 = vpop.permute.xlu0 %1112
        %1114 = vrot.lane.b32.xlu0 %v966, 32
        %v1115 = vpop.permute.xlu0 %1114
        %1116 = vrot.lane.b32.xlu0 %v967, 32
        %v1117 = vpop.permute.xlu0 %1116
        %1118 = vrot.lane.b32.xlu0 %v968, 32
        %v1119 = vpop.permute.xlu0 %1118
        %1120 = vrot.lane.b32.xlu0 %v969, 32
        %v1121 = vpop.permute.xlu0 %1120
        %1122 = vrot.lane.b32.xlu0 %v970, 32
        %v1123 = vpop.permute.xlu0 %1122
        %1140 = vrot.lane.b32.xlu0 %v971, 40
        %v1141 = vpop.permute.xlu0 %1140
        %1142 = vrot.lane.b32.xlu0 %v972, 40
        %v1143 = vpop.permute.xlu0 %1142
        %1144 = vrot.lane.b32.xlu0 %v973, 40
        %v1145 = vpop.permute.xlu0 %1144
        %1146 = vrot.lane.b32.xlu0 %v974, 40
        %v1147 = vpop.permute.xlu0 %1146
        %1148 = vrot.lane.b32.xlu0 %v975, 40
        %v1149 = vpop.permute.xlu0 %1148
        %1150 = vrot.lane.b32.xlu0 %v976, 40
        %v1151 = vpop.permute.xlu0 %1150
        %1152 = vrot.lane.b32.xlu0 %v977, 40
        %v1153 = vpop.permute.xlu0 %1152
        %1154 = vrot.lane.b32.xlu0 %v978, 40
        %v1155 = vpop.permute.xlu0 %1154
        %1172 = vrot.lane.b32.xlu0 %v980, 48
        %v1173 = vpop.permute.xlu0 %1172
        %1174 = vrot.lane.b32.xlu0 %v981, 48
        %v1175 = vpop.permute.xlu0 %1174
        %1176 = vrot.lane.b32.xlu0 %v982, 48
        %v1177 = vpop.permute.xlu0 %1176
        %1178 = vrot.lane.b32.xlu0 %v983, 48
        %v1179 = vpop.permute.xlu0 %1178
        %1180 = vrot.lane.b32.xlu0 %v984, 48
        %v1181 = vpop.permute.xlu0 %1180
        %1182 = vrot.lane.b32.xlu0 %v985, 48
        %v1183 = vpop.permute.xlu0 %1182
        %1184 = vrot.lane.b32.xlu0 %v986, 48
        %v1185 = vpop.permute.xlu0 %1184
        %1186 = vrot.lane.b32.xlu0 %v987, 48
        %v1187 = vpop.permute.xlu0 %1186
        %1204 = vrot.lane.b32.xlu0 %v988, 56
        %v1205 = vpop.permute.xlu0 %1204
        %1206 = vrot.lane.b32.xlu0 %v989, 56
        %v1207 = vpop.permute.xlu0 %1206
        %1208 = vrot.lane.b32.xlu0 %v990, 56
        %v1209 = vpop.permute.xlu0 %1208
        %1210 = vrot.lane.b32.xlu0 %v991, 56
        %v1211 = vpop.permute.xlu0 %1210
        %1212 = vrot.lane.b32.xlu0 %v992, 56
        %v1213 = vpop.permute.xlu0 %1212
        %1214 = vrot.lane.b32.xlu0 %v993, 56
        %v1215 = vpop.permute.xlu0 %1214
        %1216 = vrot.lane.b32.xlu0 %v994, 56
        %v1217 = vpop.permute.xlu0 %1216
        %1218 = vrot.lane.b32.xlu0 %v995, 56
        %v1219 = vpop.permute.xlu0 %1218
        %1236 = vrot.lane.b32.xlu0 %v996, 64
        %v1237 = vpop.permute.xlu0 %1236
        %1238 = vrot.lane.b32.xlu0 %v997, 64
        %v1239 = vpop.permute.xlu0 %1238
        %1240 = vrot.lane.b32.xlu0 %v998, 64
        %v1241 = vpop.permute.xlu0 %1240
        %1242 = vrot.lane.b32.xlu0 %v999, 64
        %v1243 = vpop.permute.xlu0 %1242
        %1244 = vrot.lane.b32.xlu0 %v1000, 64
        %v1245 = vpop.permute.xlu0 %1244
        %1246 = vrot.lane.b32.xlu0 %v1001, 64
        %v1247 = vpop.permute.xlu0 %1246
        %1248 = vrot.lane.b32.xlu0 %v1002, 64
        %v1249 = vpop.permute.xlu0 %1248
        %1250 = vrot.lane.b32.xlu0 %v1003, 64
        %v1251 = vpop.permute.xlu0 %1250
        %v1260 = vsel %vm305, %v931, %v1013
        %v1261 = vsel %vm305, %v932, %v1015
        %v1262 = vsel %vm305, %v933, %v1017
        %v1263 = vsel %vm305, %v934, %v1019
        %v1264 = vsel %vm305, %v935, %v1021
        %v1265 = vsel %vm305, %v936, %v1023
        %v1266 = vsel %vm305, %v937, %v1025
        %v1267 = vsel %vm305, %v938, %v1027
        %v1268 = vsel %vm698, %v1260, %v1045
        %v1269 = vsel %vm698, %v1261, %v1047
        %v1270 = vsel %vm698, %v1262, %v1049
        %v1271 = vsel %vm698, %v1263, %v1051
        %v1272 = vsel %vm698, %v1264, %v1053
        %v1273 = vsel %vm698, %v1265, %v1055
        %v1274 = vsel %vm698, %v1266, %v1057
        %v1275 = vsel %vm698, %v1267, %v1059
        %v1276 = vsel %vm716, %v1268, %v1077
        %v1277 = vsel %vm716, %v1269, %v1079
        %v1278 = vsel %vm716, %v1270, %v1081
        %v1279 = vsel %vm716, %v1271, %v1083
        %v1280 = vsel %vm716, %v1272, %v1085
        %v1281 = vsel %vm716, %v1273, %v1087
        %v1282 = vsel %vm716, %v1274, %v1089
        %v1283 = vsel %vm716, %v1275, %v1091
        %v1284 = vsel %vm734, %v1276, %v1109
        %v1285 = vsel %vm734, %v1277, %v1111
        %v1286 = vsel %vm734, %v1278, %v1113
        %v1287 = vsel %vm734, %v1279, %v1115
        %v1288 = vsel %vm734, %v1280, %v1117
        %v1289 = vsel %vm734, %v1281, %v1119
        %v1290 = vsel %vm734, %v1282, %v1121
        %v1291 = vsel %vm734, %v1283, %v1123
        %vm1292 = vcmask 326656
        %v1293 = vsel %vm1292, %v1284, %v1141
        %v1294 = vsel %vm1292, %v1285, %v1143
        %v1295 = vsel %vm1292, %v1286, %v1145
        %v1296 = vsel %vm1292, %v1287, %v1147
        %v1297 = vsel %vm1292, %v1288, %v1149
        %v1298 = vsel %vm1292, %v1289, %v1151
        %v1299 = vsel %vm1292, %v1290, %v1153
        %v1300 = vsel %vm1292, %v1291, %v1155
        %vm1301 = vcmask 392192
        %v1302 = vsel %vm1301, %v1293, %v1173
        %v1303 = vsel %vm1301, %v1294, %v1175
        %v1304 = vsel %vm1301, %v1295, %v1177
        %v1305 = vsel %vm1301, %v1296, %v1179
        %v1306 = vsel %vm1301, %v1297, %v1181
        %v1307 = vsel %vm1301, %v1298, %v1183
        %v1308 = vsel %vm1301, %v1299, %v1185
        %v1309 = vsel %vm1301, %v1300, %v1187
        %vm1310 = vcmask 457728
        %v1311 = vsel %vm1310, %v1302, %v1205
        %v1312 = vsel %vm1310, %v1303, %v1207
        %v1313 = vsel %vm1310, %v1304, %v1209
        %v1314 = vsel %vm1310, %v1305, %v1211
        %v1315 = vsel %vm1310, %v1306, %v1213
        %v1316 = vsel %vm1310, %v1307, %v1215
        %v1317 = vsel %vm1310, %v1308, %v1217
        %v1318 = vsel %vm1310, %v1309, %v1219
        %vm1319 = vcmask 523264
        %v1320 = vsel %vm1319, %v1311, %v1237
        %v1321 = vsel %vm1319, %v1312, %v1239
        %v1322 = vsel %vm1319, %v1313, %v1241
        %v1323 = vsel %vm1319, %v1314, %v1243
        %v1324 = vsel %vm1319, %v1315, %v1245
        %v1325 = vsel %vm1319, %v1316, %v1247
        %v1326 = vsel %vm1319, %v1317, %v1249
        %v1327 = vsel %vm1319, %v1318, %v1251
        %v1328 = vpack.c.bf16 %v1321, %v1320
        %v1329 = vpack.c.bf16 %v1323, %v1322
        %v1330 = vpack.c.bf16 %v1325, %v1324
        %v1331 = vpack.c.bf16 %v1327, %v1326
        %v1332 = vld [vmem:[%s2] sm:$0xf]
        %v1333 = vld [vmem:[%s2 + $0x4] sm:$0xf]
        %v1334 = vld [vmem:[%s2 + $0x8] sm:$0xf]
        %v1335 = vld [vmem:[%s2 + $0xc] sm:$0xf]
        %v1336 = vld [vmem:[%s2 + $0x10] sm:$0xf]
        %v1337 = vld [vmem:[%s2 + $0x14] sm:$0xf]
        %v1338 = vld [vmem:[%s2 + $0x18] sm:$0xf]
        %v1339 = vld [vmem:[%s2 + $0x1c] sm:$0xf]
        %v1340 = vld [vmem:[%s2 + $0x20] sm:$0xf]
        %v1350 = vunpack.c.l.b16 %v1332
        %v1351 = vunpack.c.l.b16 %v1333
        %v1352 = vunpack.c.l.b16 %v1334
        %v1353 = vunpack.c.l.b16 %v1335
        %v1354 = vunpack.c.l.b16 %v1336
        %v1355 = vunpack.c.l.b16 %v1337
        %v1356 = vunpack.c.l.b16 %v1338
        %v1357 = vunpack.c.l.b16 %v1339
        %v1358 = vunpack.c.l.b16 %v1340
        %v1359 = vpack.c.b16 %v1351, %v1350
        %v1360 = vpack.c.b16 %v1353, %v1352
        %v1361 = vpack.c.b16 %v1355, %v1354
        %v1362 = vpack.c.b16 %v1357, %v1356
        %v1363 = vpack.c.b16 %v1358, %v1358
        %vm1368 = vcmask 588800
        %v1370 = vsel %vm1368, %v1328, 0
        %v1373 = vsel %vm1368, %v1329, 0
        %v1376 = vsel %vm1368, %v1330, 0
        %v1379 = vsel %vm1368, %v1331, 0
        %vm1381 = vcmask 1043456
        %v1383 = vsel %vm1381, %v1363, 0
        %1385 = vmatprep.subr.bf16.mxu0 0
        %1386 = vmatpush1.bf16.msra.mxu0 %v1359
        %1387 = vmatprep.subr.bf16.mxu0 0
        %1388 = vmatpush1.bf16.msra.mxu0 %v1360
        %1389 = vmatprep.subr.bf16.mxu0 0
        %1390 = vmatpush1.bf16.msra.mxu0 %v1361
        %1391 = vmatprep.subr.bf16.mxu0 0
        %1392 = vmatpush1.bf16.msra.mxu0 %v1362
        %1393 = vmatprep.subr.bf16.mxu0 0
        %1394 = vmatpush1.bf16.msra.mxu0 %v1383
        %1395 = vmatprep.subr.bf16.mxu0 0
        %1396 = vmatpush1.bf16.msra.mxu0 0
        %1397 = vmatprep.subr.bf16.mxu0 0
        %1398 = vmatpush1.bf16.msra.mxu0 0
        %1399 = vmatprep.subr.bf16.mxu0 0
        %1400 = vmatpush1.bf16.msra.mxu0 0
        %1401 = vmatprep.subr.bf16.mxu0 0
        %1402 = vmatpush1.bf16.msra.mxu0 0
        %1403 = vmatprep.subr.bf16.mxu0 0
        %1404 = vmatpush1.bf16.msra.mxu0 0
        %1405 = vmatprep.subr.bf16.mxu0 0
        %1406 = vmatpush1.bf16.msra.mxu0 0
        %1407 = vmatprep.subr.bf16.mxu0 0
        %1408 = vmatpush1.bf16.msra.mxu0 0
        %1409 = vmatprep.subr.bf16.mxu0 0
        %1410 = vmatpush1.bf16.msra.mxu0 0
        %1411 = vmatprep.subr.bf16.mxu0 0
        %1412 = vmatpush1.bf16.msra.mxu0 0
        %1413 = vmatprep.subr.bf16.mxu0 0
        %1414 = vmatpush1.bf16.msra.mxu0 0
        %1415 = vmatprep.subr.bf16.mxu0 0
        %1416 = vmatpush1.bf16.msra.mxu0 0
        %1417 = vmatprep.mubr.bf16.mxu0 0
        %1418 = vmatmul.mubr.bf16.gmra.mrb[0].mxu0 %v1370
        %v1419 = vpop.f32.mrb[0].mxu0
        %v1420 = vadd.f32 0.0, %v1419
        %v1421 = vpop.f32.mrb[0].mxu0
        %v1422 = vpop.f32.mrb[0].mxu0
        %v1423 = vadd.f32 0.0, %v1422
        %v1424 = vpop.f32.mrb[0].mxu0
        %1425 = vmatprep.mubr.bf16.mxu0 0
        %1426 = vmatmul.mubr.bf16.gmra.mrb[0].mxu0 %v1373
        %v1427 = vpop.f32.mrb[0].mxu0
        %v1428 = vadd.f32 0.0, %v1427
        %v1429 = vpop.f32.mrb[0].mxu0
        %v1430 = vpop.f32.mrb[0].mxu0
        %v1431 = vadd.f32 0.0, %v1430
        %v1432 = vpop.f32.mrb[0].mxu0
        %1433 = vmatprep.mubr.bf16.mxu0 0
        %1434 = vmatmul.mubr.bf16.gmra.mrb[0].mxu0 %v1376
        %v1435 = vpop.f32.mrb[0].mxu0
        %v1436 = vadd.f32 0.0, %v1435
        %v1437 = vpop.f32.mrb[0].mxu0
        %v1438 = vpop.f32.mrb[0].mxu0
        %v1439 = vadd.f32 0.0, %v1438
        %v1440 = vpop.f32.mrb[0].mxu0
        %1441 = vmatprep.mubr.bf16.mxu0 0
        %1442 = vmatmul.mubr.bf16.gmra.mrb[0].mxu0 %v1379
        %v1443 = vpop.f32.mrb[0].mxu0
        %v1444 = vadd.f32 0.0, %v1443
        %v1445 = vpop.f32.mrb[0].mxu0
        %v1446 = vpop.f32.mrb[0].mxu0
        %v1447 = vadd.f32 0.0, %v1446
        %v1448 = vpop.f32.mrb[0].mxu0
        %1449 = vdwg.mxu0
        %v1450 = vsel %vm305, %v1420, 0.0
        %v1451 = vsel %vm305, %v1423, 0.0
        %v1452 = vadd.f32 %v1450, %v1451
        %v1453 = vsel %vm305, %v1428, 0.0
        %v1454 = vadd.f32 %v1452, %v1453
        %v1455 = vsel %vm305, %v1431, 0.0
        %v1456 = vadd.f32 %v1454, %v1455
        %v1457 = vsel %vm305, %v1436, 0.0
        %v1458 = vadd.f32 %v1456, %v1457
        %v1459 = vsel %vm305, %v1439, 0.0
        %v1460 = vadd.f32 %v1458, %v1459
        %v1461 = vsel %vm305, %v1444, 0.0
        %v1462 = vadd.f32 %v1460, %v1461
        %v1463 = vsel %vm305, %v1447, 0.0
        %v1464 = vadd.f32 %v1462, %v1463
        %v1465 = vrot.slane %v1464, 4
        %v1466 = vadd.f32 %v1464, %v1465
        %v1467 = vrot.slane %v1466, 2
        %v1468 = vadd.f32 %v1466, %v1467
        %v1469 = vrot.slane %v1468, 1
        %v1470 = vadd.f32 %v1468, %v1469
        %v1471 = vmul.f32 %v1470, 0.015625
        %v1472 = vmul.f32 %v1420, %v1420
        %v1473 = vmul.f32 %v1423, %v1423
        %v1474 = vmul.f32 %v1428, %v1428
        %v1475 = vmul.f32 %v1431, %v1431
        %v1476 = vmul.f32 %v1436, %v1436
        %v1477 = vmul.f32 %v1439, %v1439
        %v1478 = vmul.f32 %v1444, %v1444
        %v1479 = vmul.f32 %v1447, %v1447
        %v1480 = vsel %vm305, %v1472, 0.0
        %v1481 = vsel %vm305, %v1473, 0.0
        %v1482 = vadd.f32 %v1480, %v1481
        %v1483 = vsel %vm305, %v1474, 0.0
        %v1484 = vadd.f32 %v1482, %v1483
        %v1485 = vsel %vm305, %v1475, 0.0
        %v1486 = vadd.f32 %v1484, %v1485
        %v1487 = vsel %vm305, %v1476, 0.0
        %v1488 = vadd.f32 %v1486, %v1487
        %v1489 = vsel %vm305, %v1477, 0.0
        %v1490 = vadd.f32 %v1488, %v1489
        %v1491 = vsel %vm305, %v1478, 0.0
        %v1492 = vadd.f32 %v1490, %v1491
        %v1493 = vsel %vm305, %v1479, 0.0
        %v1494 = vadd.f32 %v1492, %v1493
        %v1495 = vrot.slane %v1494, 4
        %v1496 = vadd.f32 %v1494, %v1495
        %v1497 = vrot.slane %v1496, 2
        %v1498 = vadd.f32 %v1496, %v1497
        %v1499 = vrot.slane %v1498, 1
        %v1500 = vadd.f32 %v1498, %v1499
        %v1501 = vmul.f32 %v1500, 0.015625
        %v1502 = vmul.f32 %v1471, %v1471
        %v1503 = vsub.f32 %v1501, %v1502
        %v1504 = vmax.f32 %v1503, 0.0
        %v1505 = vsub.f32 %v1420, %v1471
        %v1506 = vsub.f32 %v1423, %v1471
        %v1507 = vsub.f32 %v1428, %v1471
        %v1508 = vsub.f32 %v1431, %v1471
        %v1509 = vsub.f32 %v1436, %v1471
        %v1510 = vsub.f32 %v1439, %v1471
        %v1511 = vsub.f32 %v1444, %v1471
        %v1512 = vsub.f32 %v1447, %v1471
        %v1513 = vadd.f32 %v1504, 1e-05
        %v1514 = vrsqrt.pop %v1513
        %v1515 = vmul.f32 %v1505, %v1514
        %v1516 = vmul.f32 %v1506, %v1514
        %v1517 = vmul.f32 %v1507, %v1514
        %v1518 = vmul.f32 %v1508, %v1514
        %v1519 = vmul.f32 %v1509, %v1514
        %v1520 = vmul.f32 %v1510, %v1514
        %v1521 = vmul.f32 %v1511, %v1514
        %v1522 = vmul.f32 %v1512, %v1514
        %vm1523 = vcmp.ge.f32.partialorder %v1515, 0.0
        %vm1524 = vcmp.ge.f32.partialorder %v1516, 0.0
        %vm1525 = vcmp.ge.f32.partialorder %v1517, 0.0
        %vm1526 = vcmp.ge.f32.partialorder %v1518, 0.0
        %vm1527 = vcmp.ge.f32.partialorder %v1519, 0.0
        %vm1528 = vcmp.ge.f32.partialorder %v1520, 0.0
        %vm1529 = vcmp.ge.f32.partialorder %v1521, 0.0
        %vm1530 = vcmp.ge.f32.partialorder %v1522, 0.0
        %v1531 = vmul.f32 %v1515, 0.01
        %v1532 = vmul.f32 %v1516, 0.01
        %v1533 = vmul.f32 %v1517, 0.01
        %v1534 = vmul.f32 %v1518, 0.01
        %v1535 = vmul.f32 %v1519, 0.01
        %v1536 = vmul.f32 %v1520, 0.01
        %v1537 = vmul.f32 %v1521, 0.01
        %v1538 = vmul.f32 %v1522, 0.01
        %v1539 = vsel %vm1523, %v1515, %v1531
        %v1540 = vsel %vm1524, %v1516, %v1532
        %v1541 = vsel %vm1525, %v1517, %v1533
        %v1542 = vsel %vm1526, %v1518, %v1534
        %v1543 = vsel %vm1527, %v1519, %v1535
        %v1544 = vsel %vm1528, %v1520, %v1536
        %v1545 = vsel %vm1529, %v1521, %v1537
        %v1546 = vsel %vm1530, %v1522, %v1538
        %1547 = vst.msk [vmem:[%s922 + $0x1] sm:$0xff] %vm305, %v1539
        %1548 = vst.msk [vmem:[%s922 + $0x11] sm:$0xff] %vm305, %v1540
        %1549 = vst.msk [vmem:[%s922 + $0x21] sm:$0xff] %vm305, %v1541
        %1550 = vst.msk [vmem:[%s922 + $0x31] sm:$0xff] %vm305, %v1542
        %1551 = vst.msk [vmem:[%s922 + $0x41] sm:$0xff] %vm305, %v1543
        %1552 = vst.msk [vmem:[%s922 + $0x51] sm:$0xff] %vm305, %v1544
        %1553 = vst.msk [vmem:[%s922 + $0x61] sm:$0xff] %vm305, %v1545
        %1554 = vst.msk [vmem:[%s922 + $0x71] sm:$0xff] %vm305, %v1546
        %v1555 = vld [vmem:[#allocation3] sm:$0xff]
        %v1556 = vld [vmem:[#allocation3 + $0x10] sm:$0xff]
        %v1557 = vld [vmem:[#allocation3 + $0x20] sm:$0xff]
        %v1558 = vld [vmem:[#allocation3 + $0x30] sm:$0xff]
        %v1559 = vld [vmem:[#allocation3 + $0x40] sm:$0xff]
        %v1560 = vld [vmem:[#allocation3 + $0x50] sm:$0xff]
        %v1561 = vld [vmem:[#allocation3 + $0x60] sm:$0xff]
        %v1562 = vld [vmem:[#allocation3 + $0x70] sm:$0xff]
        %v1563 = vld [vmem:[#allocation3 + $0x1] sm:$0xff]
        %v1564 = vld [vmem:[#allocation3 + $0x11] sm:$0xff]
        %v1565 = vld [vmem:[#allocation3 + $0x21] sm:$0xff]
        %v1566 = vld [vmem:[#allocation3 + $0x31] sm:$0xff]
        %v1567 = vld [vmem:[#allocation3 + $0x41] sm:$0xff]
        %v1568 = vld [vmem:[#allocation3 + $0x51] sm:$0xff]
        %v1569 = vld [vmem:[#allocation3 + $0x61] sm:$0xff]
        %v1570 = vld [vmem:[#allocation3 + $0x71] sm:$0xff]
        %v1571 = vld [vmem:[#allocation3 + $0x2] sm:$0xff]
        %v1572 = vld [vmem:[#allocation3 + $0x12] sm:$0xff]
        %v1573 = vld [vmem:[#allocation3 + $0x22] sm:$0xff]
        %v1574 = vld [vmem:[#allocation3 + $0x32] sm:$0xff]
        %v1575 = vld [vmem:[#allocation3 + $0x42] sm:$0xff]
        %v1576 = vld [vmem:[#allocation3 + $0x52] sm:$0xff]
        %v1577 = vld [vmem:[#allocation3 + $0x62] sm:$0xff]
        %v1578 = vld [vmem:[#allocation3 + $0x72] sm:$0xff]
        %v1579 = vld [vmem:[%s922] sm:$0xff]
        %v1580 = vld [vmem:[%s922 + $0x10] sm:$0xff]
        %v1581 = vld [vmem:[%s922 + $0x20] sm:$0xff]
        %v1582 = vld [vmem:[%s922 + $0x30] sm:$0xff]
        %v1583 = vld [vmem:[%s922 + $0x40] sm:$0xff]
        %v1584 = vld [vmem:[%s922 + $0x50] sm:$0xff]
        %v1585 = vld [vmem:[%s922 + $0x60] sm:$0xff]
        %v1586 = vld [vmem:[%s922 + $0x70] sm:$0xff]
        %v1587 = vld [vmem:[%s922 + $0x1] sm:$0xff]
        %v1588 = vld [vmem:[%s922 + $0x11] sm:$0xff]
        %v1589 = vld [vmem:[%s922 + $0x21] sm:$0xff]
        %v1590 = vld [vmem:[%s922 + $0x31] sm:$0xff]
        %v1591 = vld [vmem:[%s922 + $0x41] sm:$0xff]
        %v1592 = vld [vmem:[%s922 + $0x51] sm:$0xff]
        %v1593 = vld [vmem:[%s922 + $0x61] sm:$0xff]
        %v1594 = vld [vmem:[%s922 + $0x71] sm:$0xff]
        %v1595 = vld [vmem:[%s922 + $0x2] sm:$0xff]
        %v1596 = vld [vmem:[%s922 + $0x12] sm:$0xff]
        %v1597 = vld [vmem:[%s922 + $0x22] sm:$0xff]
        %v1598 = vld [vmem:[%s922 + $0x32] sm:$0xff]
        %v1599 = vld [vmem:[%s922 + $0x42] sm:$0xff]
        %v1600 = vld [vmem:[%s922 + $0x52] sm:$0xff]
        %v1601 = vld [vmem:[%s922 + $0x62] sm:$0xff]
        %v1602 = vld [vmem:[%s922 + $0x72] sm:$0xff]
        %v1603 = vld [vmem:[%s979] sm:$0xff]
        %v1604 = vld [vmem:[%s979 + $0x10] sm:$0xff]
        %v1605 = vld [vmem:[%s979 + $0x20] sm:$0xff]
        %v1606 = vld [vmem:[%s979 + $0x30] sm:$0xff]
        %v1607 = vld [vmem:[%s979 + $0x40] sm:$0xff]
        %v1608 = vld [vmem:[%s979 + $0x50] sm:$0xff]
        %v1609 = vld [vmem:[%s979 + $0x60] sm:$0xff]
        %v1610 = vld [vmem:[%s979 + $0x70] sm:$0xff]
        %v1611 = vld [vmem:[%s979 + $0x1] sm:$0xff]
        %v1612 = vld [vmem:[%s979 + $0x11] sm:$0xff]
        %v1613 = vld [vmem:[%s979 + $0x21] sm:$0xff]
        %v1614 = vld [vmem:[%s979 + $0x31] sm:$0xff]
        %v1615 = vld [vmem:[%s979 + $0x41] sm:$0xff]
        %v1616 = vld [vmem:[%s979 + $0x51] sm:$0xff]
        %v1617 = vld [vmem:[%s979 + $0x61] sm:$0xff]
        %v1618 = vld [vmem:[%s979 + $0x71] sm:$0xff]
        %v1619 = vld [vmem:[%s979 + $0x2] sm:$0xff]
        %v1620 = vld [vmem:[%s979 + $0x12] sm:$0xff]
        %v1621 = vld [vmem:[%s979 + $0x22] sm:$0xff]
        %v1622 = vld [vmem:[%s979 + $0x32] sm:$0xff]
        %v1623 = vld [vmem:[%s979 + $0x42] sm:$0xff]
        %v1624 = vld [vmem:[%s979 + $0x52] sm:$0xff]
        %v1625 = vld [vmem:[%s979 + $0x62] sm:$0xff]
        %v1626 = vld [vmem:[%s979 + $0x72] sm:$0xff]
        %1635 = vrot.lane.b32.xlu0 %v1563, 8
        %v1636 = vpop.permute.xlu0 %1635
        %1637 = vrot.lane.b32.xlu0 %v1564, 8
        %v1638 = vpop.permute.xlu0 %1637
        %1639 = vrot.lane.b32.xlu0 %v1565, 8
        %v1640 = vpop.permute.xlu0 %1639
        %1641 = vrot.lane.b32.xlu0 %v1566, 8
        %v1642 = vpop.permute.xlu0 %1641
        %1643 = vrot.lane.b32.xlu0 %v1567, 8
        %v1644 = vpop.permute.xlu0 %1643
        %1645 = vrot.lane.b32.xlu0 %v1568, 8
        %v1646 = vpop.permute.xlu0 %1645
        %1647 = vrot.lane.b32.xlu0 %v1569, 8
        %v1648 = vpop.permute.xlu0 %1647
        %1649 = vrot.lane.b32.xlu0 %v1570, 8
        %v1650 = vpop.permute.xlu0 %1649
        %1667 = vrot.lane.b32.xlu0 %v1571, 16
        %v1668 = vpop.permute.xlu0 %1667
        %1669 = vrot.lane.b32.xlu0 %v1572, 16
        %v1670 = vpop.permute.xlu0 %1669
        %1671 = vrot.lane.b32.xlu0 %v1573, 16
        %v1672 = vpop.permute.xlu0 %1671
        %1673 = vrot.lane.b32.xlu0 %v1574, 16
        %v1674 = vpop.permute.xlu0 %1673
        %1675 = vrot.lane.b32.xlu0 %v1575, 16
        %v1676 = vpop.permute.xlu0 %1675
        %1677 = vrot.lane.b32.xlu0 %v1576, 16
        %v1678 = vpop.permute.xlu0 %1677
        %1679 = vrot.lane.b32.xlu0 %v1577, 16
        %v1680 = vpop.permute.xlu0 %1679
        %1681 = vrot.lane.b32.xlu0 %v1578, 16
        %v1682 = vpop.permute.xlu0 %1681
        %1699 = vrot.lane.b32.xlu0 %v1579, 24
        %v1700 = vpop.permute.xlu0 %1699
        %1701 = vrot.lane.b32.xlu0 %v1580, 24
        %v1702 = vpop.permute.xlu0 %1701
        %1703 = vrot.lane.b32.xlu0 %v1581, 24
        %v1704 = vpop.permute.xlu0 %1703
        %1705 = vrot.lane.b32.xlu0 %v1582, 24
        %v1706 = vpop.permute.xlu0 %1705
        %1707 = vrot.lane.b32.xlu0 %v1583, 24
        %v1708 = vpop.permute.xlu0 %1707
        %1709 = vrot.lane.b32.xlu0 %v1584, 24
        %v1710 = vpop.permute.xlu0 %1709
        %1711 = vrot.lane.b32.xlu0 %v1585, 24
        %v1712 = vpop.permute.xlu0 %1711
        %1713 = vrot.lane.b32.xlu0 %v1586, 24
        %v1714 = vpop.permute.xlu0 %1713
        %1731 = vrot.lane.b32.xlu0 %v1587, 32
        %v1732 = vpop.permute.xlu0 %1731
        %1733 = vrot.lane.b32.xlu0 %v1588, 32
        %v1734 = vpop.permute.xlu0 %1733
        %1735 = vrot.lane.b32.xlu0 %v1589, 32
        %v1736 = vpop.permute.xlu0 %1735
        %1737 = vrot.lane.b32.xlu0 %v1590, 32
        %v1738 = vpop.permute.xlu0 %1737
        %1739 = vrot.lane.b32.xlu0 %v1591, 32
        %v1740 = vpop.permute.xlu0 %1739
        %1741 = vrot.lane.b32.xlu0 %v1592, 32
        %v1742 = vpop.permute.xlu0 %1741
        %1743 = vrot.lane.b32.xlu0 %v1593, 32
        %v1744 = vpop.permute.xlu0 %1743
        %1745 = vrot.lane.b32.xlu0 %v1594, 32
        %v1746 = vpop.permute.xlu0 %1745
        %1763 = vrot.lane.b32.xlu0 %v1595, 40
        %v1764 = vpop.permute.xlu0 %1763
        %1765 = vrot.lane.b32.xlu0 %v1596, 40
        %v1766 = vpop.permute.xlu0 %1765
        %1767 = vrot.lane.b32.xlu0 %v1597, 40
        %v1768 = vpop.permute.xlu0 %1767
        %1769 = vrot.lane.b32.xlu0 %v1598, 40
        %v1770 = vpop.permute.xlu0 %1769
        %1771 = vrot.lane.b32.xlu0 %v1599, 40
        %v1772 = vpop.permute.xlu0 %1771
        %1773 = vrot.lane.b32.xlu0 %v1600, 40
        %v1774 = vpop.permute.xlu0 %1773
        %1775 = vrot.lane.b32.xlu0 %v1601, 40
        %v1776 = vpop.permute.xlu0 %1775
        %1777 = vrot.lane.b32.xlu0 %v1602, 40
        %v1778 = vpop.permute.xlu0 %1777
        %1795 = vrot.lane.b32.xlu0 %v1603, 48
        %v1796 = vpop.permute.xlu0 %1795
        %1797 = vrot.lane.b32.xlu0 %v1604, 48
        %v1798 = vpop.permute.xlu0 %1797
        %1799 = vrot.lane.b32.xlu0 %v1605, 48
        %v1800 = vpop.permute.xlu0 %1799
        %1801 = vrot.lane.b32.xlu0 %v1606, 48
        %v1802 = vpop.permute.xlu0 %1801
        %1803 = vrot.lane.b32.xlu0 %v1607, 48
        %v1804 = vpop.permute.xlu0 %1803
        %1805 = vrot.lane.b32.xlu0 %v1608, 48
        %v1806 = vpop.permute.xlu0 %1805
        %1807 = vrot.lane.b32.xlu0 %v1609, 48
        %v1808 = vpop.permute.xlu0 %1807
        %1809 = vrot.lane.b32.xlu0 %v1610, 48
        %v1810 = vpop.permute.xlu0 %1809
        %1827 = vrot.lane.b32.xlu0 %v1611, 56
        %v1828 = vpop.permute.xlu0 %1827
        %1829 = vrot.lane.b32.xlu0 %v1612, 56
        %v1830 = vpop.permute.xlu0 %1829
        %1831 = vrot.lane.b32.xlu0 %v1613, 56
        %v1832 = vpop.permute.xlu0 %1831
        %1833 = vrot.lane.b32.xlu0 %v1614, 56
        %v1834 = vpop.permute.xlu0 %1833
        %1835 = vrot.lane.b32.xlu0 %v1615, 56
        %v1836 = vpop.permute.xlu0 %1835
        %1837 = vrot.lane.b32.xlu0 %v1616, 56
        %v1838 = vpop.permute.xlu0 %1837
        %1839 = vrot.lane.b32.xlu0 %v1617, 56
        %v1840 = vpop.permute.xlu0 %1839
        %1841 = vrot.lane.b32.xlu0 %v1618, 56
        %v1842 = vpop.permute.xlu0 %1841
        %1859 = vrot.lane.b32.xlu0 %v1619, 64
        %v1860 = vpop.permute.xlu0 %1859
        %1861 = vrot.lane.b32.xlu0 %v1620, 64
        %v1862 = vpop.permute.xlu0 %1861
        %1863 = vrot.lane.b32.xlu0 %v1621, 64
        %v1864 = vpop.permute.xlu0 %1863
        %1865 = vrot.lane.b32.xlu0 %v1622, 64
        %v1866 = vpop.permute.xlu0 %1865
        %1867 = vrot.lane.b32.xlu0 %v1623, 64
        %v1868 = vpop.permute.xlu0 %1867
        %1869 = vrot.lane.b32.xlu0 %v1624, 64
        %v1870 = vpop.permute.xlu0 %1869
        %1871 = vrot.lane.b32.xlu0 %v1625, 64
        %v1872 = vpop.permute.xlu0 %1871
        %1873 = vrot.lane.b32.xlu0 %v1626, 64
        %v1874 = vpop.permute.xlu0 %1873
        %v1883 = vsel %vm305, %v1555, %v1636
        %v1884 = vsel %vm305, %v1556, %v1638
        %v1885 = vsel %vm305, %v1557, %v1640
        %v1886 = vsel %vm305, %v1558, %v1642
        %v1887 = vsel %vm305, %v1559, %v1644
        %v1888 = vsel %vm305, %v1560, %v1646
        %v1889 = vsel %vm305, %v1561, %v1648
        %v1890 = vsel %vm305, %v1562, %v1650
        %v1891 = vsel %vm698, %v1883, %v1668
        %v1892 = vsel %vm698, %v1884, %v1670
        %v1893 = vsel %vm698, %v1885, %v1672
        %v1894 = vsel %vm698, %v1886, %v1674
        %v1895 = vsel %vm698, %v1887, %v1676
        %v1896 = vsel %vm698, %v1888, %v1678
        %v1897 = vsel %vm698, %v1889, %v1680
        %v1898 = vsel %vm698, %v1890, %v1682
        %v1899 = vsel %vm716, %v1891, %v1700
        %v1900 = vsel %vm716, %v1892, %v1702
        %v1901 = vsel %vm716, %v1893, %v1704
        %v1902 = vsel %vm716, %v1894, %v1706
        %v1903 = vsel %vm716, %v1895, %v1708
        %v1904 = vsel %vm716, %v1896, %v1710
        %v1905 = vsel %vm716, %v1897, %v1712
        %v1906 = vsel %vm716, %v1898, %v1714
        %v1907 = vsel %vm734, %v1899, %v1732
        %v1908 = vsel %vm734, %v1900, %v1734
        %v1909 = vsel %vm734, %v1901, %v1736
        %v1910 = vsel %vm734, %v1902, %v1738
        %v1911 = vsel %vm734, %v1903, %v1740
        %v1912 = vsel %vm734, %v1904, %v1742
        %v1913 = vsel %vm734, %v1905, %v1744
        %v1914 = vsel %vm734, %v1906, %v1746
        %v1915 = vsel %vm1292, %v1907, %v1764
        %v1916 = vsel %vm1292, %v1908, %v1766
        %v1917 = vsel %vm1292, %v1909, %v1768
        %v1918 = vsel %vm1292, %v1910, %v1770
        %v1919 = vsel %vm1292, %v1911, %v1772
        %v1920 = vsel %vm1292, %v1912, %v1774
        %v1921 = vsel %vm1292, %v1913, %v1776
        %v1922 = vsel %vm1292, %v1914, %v1778
        %v1923 = vsel %vm1301, %v1915, %v1796
        %v1924 = vsel %vm1301, %v1916, %v1798
        %v1925 = vsel %vm1301, %v1917, %v1800
        %v1926 = vsel %vm1301, %v1918, %v1802
        %v1927 = vsel %vm1301, %v1919, %v1804
        %v1928 = vsel %vm1301, %v1920, %v1806
        %v1929 = vsel %vm1301, %v1921, %v1808
        %v1930 = vsel %vm1301, %v1922, %v1810
        %v1931 = vsel %vm1310, %v1923, %v1828
        %v1932 = vsel %vm1310, %v1924, %v1830
        %v1933 = vsel %vm1310, %v1925, %v1832
        %v1934 = vsel %vm1310, %v1926, %v1834
        %v1935 = vsel %vm1310, %v1927, %v1836
        %v1936 = vsel %vm1310, %v1928, %v1838
        %v1937 = vsel %vm1310, %v1929, %v1840
        %v1938 = vsel %vm1310, %v1930, %v1842
        %v1939 = vsel %vm1319, %v1931, %v1860
        %v1940 = vsel %vm1319, %v1932, %v1862
        %v1941 = vsel %vm1319, %v1933, %v1864
        %v1942 = vsel %vm1319, %v1934, %v1866
        %v1943 = vsel %vm1319, %v1935, %v1868
        %v1944 = vsel %vm1319, %v1936, %v1870
        %v1945 = vsel %vm1319, %v1937, %v1872
        %v1946 = vsel %vm1319, %v1938, %v1874
        %v1947 = vpack.c.bf16 %v1940, %v1939
        %v1948 = vpack.c.bf16 %v1942, %v1941
        %v1949 = vpack.c.bf16 %v1944, %v1943
        %v1950 = vpack.c.bf16 %v1946, %v1945
        %v1951 = vld [vmem:[%s3] sm:$0xf]
        %v1952 = vld [vmem:[%s3 + $0x4] sm:$0xf]
        %v1953 = vld [vmem:[%s3 + $0x8] sm:$0xf]
        %v1954 = vld [vmem:[%s3 + $0xc] sm:$0xf]
        %v1955 = vld [vmem:[%s3 + $0x10] sm:$0xf]
        %v1956 = vld [vmem:[%s3 + $0x14] sm:$0xf]
        %v1957 = vld [vmem:[%s3 + $0x18] sm:$0xf]
        %v1958 = vld [vmem:[%s3 + $0x1c] sm:$0xf]
        %v1959 = vld [vmem:[%s3 + $0x20] sm:$0xf]
        %v1969 = vunpack.c.l.b16 %v1951
        %v1970 = vunpack.c.l.b16 %v1952
        %v1971 = vunpack.c.l.b16 %v1953
        %v1972 = vunpack.c.l.b16 %v1954
        %v1973 = vunpack.c.l.b16 %v1955
        %v1974 = vunpack.c.l.b16 %v1956
        %v1975 = vunpack.c.l.b16 %v1957
        %v1976 = vunpack.c.l.b16 %v1958
        %v1977 = vunpack.c.l.b16 %v1959
        %v1978 = vpack.c.b16 %v1970, %v1969
        %v1979 = vpack.c.b16 %v1972, %v1971
        %v1980 = vpack.c.b16 %v1974, %v1973
        %v1981 = vpack.c.b16 %v1976, %v1975
        %v1982 = vpack.c.b16 %v1977, %v1977
        %v1988 = vsel %vm1368, %v1947, 0
        %v1991 = vsel %vm1368, %v1948, 0
        %v1994 = vsel %vm1368, %v1949, 0
        %v1997 = vsel %vm1368, %v1950, 0
        %v2000 = vsel %vm1381, %v1982, 0
        %2002 = vmatprep.subr.bf16.mxu0 0
        %2003 = vmatpush1.bf16.msra.mxu0 %v1978
        %2004 = vmatprep.subr.bf16.mxu0 0
        %2005 = vmatpush1.bf16.msra.mxu0 %v1979
        %2006 = vmatprep.subr.bf16.mxu0 0
        %2007 = vmatpush1.bf16.msra.mxu0 %v1980
        %2008 = vmatprep.subr.bf16.mxu0 0
        %2009 = vmatpush1.bf16.msra.mxu0 %v1981
        %2010 = vmatprep.subr.bf16.mxu0 0
        %2011 = vmatpush1.bf16.msra.mxu0 %v2000
        %2012 = vmatprep.subr.bf16.mxu0 0
        %2013 = vmatpush1.bf16.msra.mxu0 0
        %2014 = vmatprep.subr.bf16.mxu0 0
        %2015 = vmatpush1.bf16.msra.mxu0 0
        %2016 = vmatprep.subr.bf16.mxu0 0
        %2017 = vmatpush1.bf16.msra.mxu0 0
        %2018 = vmatprep.subr.bf16.mxu0 0
        %2019 = vmatpush1.bf16.msra.mxu0 0
        %2020 = vmatprep.subr.bf16.mxu0 0
        %2021 = vmatpush1.bf16.msra.mxu0 0
        %2022 = vmatprep.subr.bf16.mxu0 0
        %2023 = vmatpush1.bf16.msra.mxu0 0
        %2024 = vmatprep.subr.bf16.mxu0 0
        %2025 = vmatpush1.bf16.msra.mxu0 0
        %2026 = vmatprep.subr.bf16.mxu0 0
        %2027 = vmatpush1.bf16.msra.mxu0 0
        %2028 = vmatprep.subr.bf16.mxu0 0
        %2029 = vmatpush1.bf16.msra.mxu0 0
        %2030 = vmatprep.subr.bf16.mxu0 0
        %2031 = vmatpush1.bf16.msra.mxu0 0
        %2032 = vmatprep.subr.bf16.mxu0 0
        %2033 = vmatpush1.bf16.msra.mxu0 0
        %2034 = vmatprep.mubr.bf16.mxu0 0
        %2035 = vmatmul.mubr.bf16.gmra.mrb[0].mxu0 %v1988
        %v2036 = vpop.f32.mrb[0].mxu0
        %v2037 = vadd.f32 0.0, %v2036
        %v2038 = vpop.f32.mrb[0].mxu0
        %v2039 = vpop.f32.mrb[0].mxu0
        %v2040 = vadd.f32 0.0, %v2039
        %v2041 = vpop.f32.mrb[0].mxu0
        %2042 = vmatprep.mubr.bf16.mxu0 0
        %2043 = vmatmul.mubr.bf16.gmra.mrb[0].mxu0 %v1991
        %v2044 = vpop.f32.mrb[0].mxu0
        %v2045 = vadd.f32 0.0, %v2044
        %v2046 = vpop.f32.mrb[0].mxu0
        %v2047 = vpop.f32.mrb[0].mxu0
        %v2048 = vadd.f32 0.0, %v2047
        %v2049 = vpop.f32.mrb[0].mxu0
        %2050 = vmatprep.mubr.bf16.mxu0 0
        %2051 = vmatmul.mubr.bf16.gmra.mrb[0].mxu0 %v1994
        %v2052 = vpop.f32.mrb[0].mxu0
        %v2053 = vadd.f32 0.0, %v2052
        %v2054 = vpop.f32.mrb[0].mxu0
        %v2055 = vpop.f32.mrb[0].mxu0
        %v2056 = vadd.f32 0.0, %v2055
        %v2057 = vpop.f32.mrb[0].mxu0
        %2058 = vmatprep.mubr.bf16.mxu0 0
        %2059 = vmatmul.mubr.bf16.gmra.mrb[0].mxu0 %v1997
        %v2060 = vpop.f32.mrb[0].mxu0
        %v2061 = vadd.f32 0.0, %v2060
        %v2062 = vpop.f32.mrb[0].mxu0
        %v2063 = vpop.f32.mrb[0].mxu0
        %v2064 = vadd.f32 0.0, %v2063
        %v2065 = vpop.f32.mrb[0].mxu0
        %2066 = vdwg.mxu0
        %v2067 = vsel %vm305, %v2037, 0.0
        %v2068 = vsel %vm305, %v2040, 0.0
        %v2069 = vadd.f32 %v2067, %v2068
        %v2070 = vsel %vm305, %v2045, 0.0
        %v2071 = vadd.f32 %v2069, %v2070
        %v2072 = vsel %vm305, %v2048, 0.0
        %v2073 = vadd.f32 %v2071, %v2072
        %v2074 = vsel %vm305, %v2053, 0.0
        %v2075 = vadd.f32 %v2073, %v2074
        %v2076 = vsel %vm305, %v2056, 0.0
        %v2077 = vadd.f32 %v2075, %v2076
        %v2078 = vsel %vm305, %v2061, 0.0
        %v2079 = vadd.f32 %v2077, %v2078
        %v2080 = vsel %vm305, %v2064, 0.0
        %v2081 = vadd.f32 %v2079, %v2080
        %v2082 = vrot.slane %v2081, 4
        %v2083 = vadd.f32 %v2081, %v2082
        %v2084 = vrot.slane %v2083, 2
        %v2085 = vadd.f32 %v2083, %v2084
        %v2086 = vrot.slane %v2085, 1
        %v2087 = vadd.f32 %v2085, %v2086
        %v2088 = vmul.f32 %v2087, 0.015625
        %v2089 = vmul.f32 %v2037, %v2037
        %v2090 = vmul.f32 %v2040, %v2040
        %v2091 = vmul.f32 %v2045, %v2045
        %v2092 = vmul.f32 %v2048, %v2048
        %v2093 = vmul.f32 %v2053, %v2053
        %v2094 = vmul.f32 %v2056, %v2056
        %v2095 = vmul.f32 %v2061, %v2061
        %v2096 = vmul.f32 %v2064, %v2064
        %v2097 = vsel %vm305, %v2089, 0.0
        %v2098 = vsel %vm305, %v2090, 0.0
        %v2099 = vadd.f32 %v2097, %v2098
        %v2100 = vsel %vm305, %v2091, 0.0
        %v2101 = vadd.f32 %v2099, %v2100
        %v2102 = vsel %vm305, %v2092, 0.0
        %v2103 = vadd.f32 %v2101, %v2102
        %v2104 = vsel %vm305, %v2093, 0.0
        %v2105 = vadd.f32 %v2103, %v2104
        %v2106 = vsel %vm305, %v2094, 0.0
        %v2107 = vadd.f32 %v2105, %v2106
        %v2108 = vsel %vm305, %v2095, 0.0
        %v2109 = vadd.f32 %v2107, %v2108
        %v2110 = vsel %vm305, %v2096, 0.0
        %v2111 = vadd.f32 %v2109, %v2110
        %v2112 = vrot.slane %v2111, 4
        %v2113 = vadd.f32 %v2111, %v2112
        %v2114 = vrot.slane %v2113, 2
        %v2115 = vadd.f32 %v2113, %v2114
        %v2116 = vrot.slane %v2115, 1
        %v2117 = vadd.f32 %v2115, %v2116
        %v2118 = vmul.f32 %v2117, 0.015625
        %v2119 = vmul.f32 %v2088, %v2088
        %v2120 = vsub.f32 %v2118, %v2119
        %v2121 = vmax.f32 %v2120, 0.0
        %v2122 = vsub.f32 %v2037, %v2088
        %v2123 = vsub.f32 %v2040, %v2088
        %v2124 = vsub.f32 %v2045, %v2088
        %v2125 = vsub.f32 %v2048, %v2088
        %v2126 = vsub.f32 %v2053, %v2088
        %v2127 = vsub.f32 %v2056, %v2088
        %v2128 = vsub.f32 %v2061, %v2088
        %v2129 = vsub.f32 %v2064, %v2088
        %v2130 = vadd.f32 %v2121, 1e-05
        %v2131 = vrsqrt.pop %v2130
        %v2132 = vmul.f32 %v2122, %v2131
        %v2133 = vmul.f32 %v2123, %v2131
        %v2134 = vmul.f32 %v2124, %v2131
        %v2135 = vmul.f32 %v2125, %v2131
        %v2136 = vmul.f32 %v2126, %v2131
        %v2137 = vmul.f32 %v2127, %v2131
        %v2138 = vmul.f32 %v2128, %v2131
        %v2139 = vmul.f32 %v2129, %v2131
        %vm2140 = vcmp.ge.f32.partialorder %v2132, 0.0
        %vm2141 = vcmp.ge.f32.partialorder %v2133, 0.0
        %vm2142 = vcmp.ge.f32.partialorder %v2134, 0.0
        %vm2143 = vcmp.ge.f32.partialorder %v2135, 0.0
        %vm2144 = vcmp.ge.f32.partialorder %v2136, 0.0
        %vm2145 = vcmp.ge.f32.partialorder %v2137, 0.0
        %vm2146 = vcmp.ge.f32.partialorder %v2138, 0.0
        %vm2147 = vcmp.ge.f32.partialorder %v2139, 0.0
        %v2148 = vmul.f32 %v2132, 0.01
        %v2149 = vmul.f32 %v2133, 0.01
        %v2150 = vmul.f32 %v2134, 0.01
        %v2151 = vmul.f32 %v2135, 0.01
        %v2152 = vmul.f32 %v2136, 0.01
        %v2153 = vmul.f32 %v2137, 0.01
        %v2154 = vmul.f32 %v2138, 0.01
        %v2155 = vmul.f32 %v2139, 0.01
        %v2156 = vsel %vm2140, %v2132, %v2148
        %v2157 = vsel %vm2141, %v2133, %v2149
        %v2158 = vsel %vm2142, %v2134, %v2150
        %v2159 = vsel %vm2143, %v2135, %v2151
        %v2160 = vsel %vm2144, %v2136, %v2152
        %v2161 = vsel %vm2145, %v2137, %v2153
        %v2162 = vsel %vm2146, %v2138, %v2154
        %v2163 = vsel %vm2147, %v2139, %v2155
        %2164 = vst.msk [vmem:[%s217] sm:$0xff] %vm305, %v2156
        %2165 = vst.msk [vmem:[%s217 + $0x8] sm:$0xff] %vm305, %v2157
        %2166 = vst.msk [vmem:[%s217 + $0x10] sm:$0xff] %vm305, %v2158
        %2167 = vst.msk [vmem:[%s217 + $0x18] sm:$0xff] %vm305, %v2159
        %2168 = vst.msk [vmem:[%s217 + $0x20] sm:$0xff] %vm305, %v2160
        %2169 = vst.msk [vmem:[%s217 + $0x28] sm:$0xff] %vm305, %v2161
        %2170 = vst.msk [vmem:[%s217 + $0x30] sm:$0xff] %vm305, %v2162
        %2171 = vst.msk [vmem:[%s217 + $0x38] sm:$0xff] %vm305, %v2163
        %p2172 = scmp.lt.s32.totalorder %s18, 1
        %s2173 = scalar_select %p2172, %s18, 1
        %s2174 = smul.addr %s2173, 8
        %s2175 = smul.addr %s2174, 8
        %s2176 = scalar_lea.vmem %s4, %s2175
        // Predicated region
        $region41: #{tpu_custom_call.1} parent=35 // pred_check
          %p2177 = pneg %p125
        $region42: #{tpu_custom_call.1} parent=35 // pred_check_branch
          %2179 = sbr.rel (%p2177) target = $region44
        $region43: #{tpu_custom_call.1} parent=35 // pred_region
          _
        $region44: #{tpu_custom_call.1} parent=35 // pred_fallthru
          _
      $region36: #{tpu_custom_call.1} parent=5 // pred_fallthru
        _
      %p2180 = scmp.le.s32.totalorder 2, %s13
      // Predicated region
      $region45: #{tpu_custom_call.1} parent=5 // pred_check
        %p2181 = pneg %p2180
      $region46: #{tpu_custom_call.1} parent=5 // pred_check_branch
        %2183 = sbr.rel (%p2181) target = $region48
      $region47: #{tpu_custom_call.1} parent=5 // pred_region
        %s2184 = ssub.s32 %s13, 2
        // Predicated region
        $region49: #{tpu_custom_call.1} parent=47 // pred_check
          %p2185 = pneg %p131
        $region50: #{tpu_custom_call.1} parent=47 // pred_check_branch
          %2187 = sbr.rel (%p2185) target = $region52
        $region51: #{tpu_custom_call.1} parent=47 // pred_region
          %p2188 = scmp.lt.s32.totalorder %s19, 1
          %s2189 = scalar_select %p2188, %s19, 1
          %s2190 = smul.addr %s2189, 8
          %s2191 = smul.addr %s2190, 8
          %s2192 = scalar_lea.vmem %s4, %s2191
        $region52: #{tpu_custom_call.1} parent=47 // pred_fallthru
          _
      $region48: #{tpu_custom_call.1} parent=5 // pred_fallthru
        _
    $region6: #{tpu_custom_call.1} parent=1 // loop_footer
      %s17 = sadd.s32 1, %s13
    $region7: #{tpu_custom_call.1} parent=1 // loop_footer_branch
      %12 = sbr.rel target = $region3
    $region8: #{tpu_custom_call.1} parent=1 // loop_exit
      _
    %2193 = vsyncpa [#allocation5], 1
    %s2194 = scalar_lea.sflag [#allocation5], 1
    %2195 = vsyncpa %s2194, 1

</llo_original>
